<compile_context>
chip_gen: v6e
topology: v6e:2x2x1
jax: 0.10.0
libtpu: 0.0.40
codegen_flags: <defaults>
</compile_context>

<pallas_src>
import functools

import jax
import jax.numpy as jnp
from jax import lax
from jax.experimental import pallas as pl
from jax.experimental.pallas import tpu as pltpu


def _round_up(v, m):
    return -(-v // m) * m


def _pad_last(a, target):
    c = a.shape[-1]
    if c == target:
        return a
    return jnp.pad(a, [(0, 0)] * (a.ndim - 1) + [(0, target - c)])


def _fold_bn(w, bn, eps=1e-5):
    """Fold inference BatchNorm into conv weights: y = conv(x, w*scale) + bias."""
    gamma, beta, mean, var = bn
    scale = gamma * lax.rsqrt(var + eps)
    return w * scale, beta - mean * scale


def _phase_split(x, kh, kw, stride, pad):
    """Zero-pad x and split into stride phases.

    Returns xp of shape (N, s*s, Hpp, Wpp, C) with
        xp[:, b*s + c, i, j, :] == x_pad[:, s*i + b, s*j + c, :]
    so a stride-s KHxKW conv becomes unit-stride shifted-window matmuls on xp.
    """
    s = stride
    _, h, w, _ = x.shape
    hp, wp = h + 2 * pad, w + 2 * pad
    h_out = (hp - kh) // s + 1
    w_out = (wp - kw) // s + 1
    hpp = h_out + (kh - 1) // s
    wpp = w_out + (kw - 1) // s
    xpad = jnp.pad(x, ((0, 0), (pad, pad), (pad, pad), (0, 0))) if pad else x
    phases = []
    for b in range(s):
        for c in range(s):
            ph = xpad[:, b::s, c::s, :][:, :hpp, :wpp, :]
            ph = jnp.pad(ph, ((0, 0), (0, hpp - ph.shape[1]),
                              (0, wpp - ph.shape[2]), (0, 0)))
            phases.append(ph)
    return jnp.stack(phases, axis=1), h_out, w_out


def _im2col(x, kh, kw, stride, pad, cin, kp):
    """Patches (N, 1, h_out, w_out, kp) with K = kh*kw*cin zero-padded to kp (bf16)."""
    x = x[..., :cin].astype(jnp.bfloat16)
    xpad = jnp.pad(x, ((0, 0), (pad, pad), (pad, pad), (0, 0))) if pad else x
    hp, wp = xpad.shape[1], xpad.shape[2]
    h_out = (hp - kh) // stride + 1
    w_out = (wp - kw) // stride + 1
    wins = []
    for r in range(kh):
        for c in range(kw):
            wins.append(xpad[:, r:r + (h_out - 1) * stride + 1:stride,
                             c:c + (w_out - 1) * stride + 1:stride, :])
    patches = jnp.concatenate(wins, axis=-1)          # (N, h_out, w_out, kh*kw*cin)
    return _pad_last(patches, kp)[:, None], h_out, w_out   # phase axis of size 1


def _pick_tile_h(h_out, w_out):
    """Divisor th of h_out: largest with th*w_out <= 512 rows; if still < 256 rows
    (MXU-starved on the 256-deep v6e/v7x MXU), allow up to 1024 rows."""
    divs = [d for d in range(1, h_out + 1) if h_out % d == 0]
    best = max([d for d in divs if d * w_out <= 512], default=1)
    if best * w_out < 256:
        best = max([d for d in divs if d * w_out <= 1024], default=best)
    return best


def _make_conv_kernel(stride, relu, shortcut, whole_image_input):
    """conv (taps as shifted-window matmuls into a VMEM f32 acc) + bias
    [+ fused shortcut] [+ ReLU]."""
    s = stride

    def kernel(*refs):
        if shortcut == "proj":
            xp_ref, w_ref, b_ref, sx_ref, sw_ref, sb_ref, out_ref, acc_ref = refs
        elif shortcut == "identity":
            xp_ref, w_ref, b_ref, sx_ref, out_ref, acc_ref = refs
        else:
            xp_ref, w_ref, b_ref, out_ref, acc_ref = refs

        kh_sz, kw_sz, cin_p, cout_t = w_ref.shape
        _, th, w_out, _ = out_ref.shape
        tm = th * w_out
        # h offset inside the input block: 0 when the BlockSpec already delivers the
        # h tile (im2col path), program_id(2)*th when the whole image is resident.
        if whole_image_input:
            h0 = pl.multiple_of(pl.program_id(2) * th, th)
        else:
            h0 = 0

        # Taps as bf16 matmuls accumulated in place into the f32 VMEM scratch; window
        # slices are unit-stride because the stride lives in the phase axis.
        first = True
        for kh in range(kh_sz):
            for kw in range(kw_sz):
                p = (kh % s) * s + (kw % s)
                ro, co = kh // s, kw // s
                patch = xp_ref[0, p, pl.ds(h0 + ro, th), co:co + w_out, :]
                contrib = jnp.dot(patch.reshape(tm, cin_p), w_ref[kh, kw],
                                  preferred_element_type=jnp.float32)
                if first:
                    acc_ref[...] = contrib
                    first = False
                else:
                    acc_ref[...] += contrib

        y = acc_ref[...] + b_ref[...]                 # BN folded into weights: bias only
        if shortcut == "proj":                        # fused 1x1-conv/BN shortcut
            sx = sx_ref[0].reshape(tm, sx_ref.shape[-1])
            y = y + jnp.dot(sx, sw_ref[...], preferred_element_type=jnp.float32)
            y = y + sb_ref[...]
        elif shortcut == "identity":                  # bf16 transport, f32 add
            y = y + sx_ref[0].reshape(tm, cout_t).astype(jnp.float32)
        if relu:
            y = jnp.maximum(y, 0.0)
        out_ref[0] = y.reshape(th, w_out, cout_t).astype(out_ref.dtype)

    return kernel


def conv_bn_act(x, w, bn, *, stride=1, pad=1, relu=False, shortcut=None,
                eps=1e-5, out_dtype=jnp.bfloat16):
    """Conv2d(no bias) + folded inference BN [+ fused shortcut] [+ ReLU] as one pallas_call.

    x: (N, H, W, C) NHWC with C >= w.shape[2] (possibly channel-padded).
    w: (KH, KW, Cin, Cout).  Returns (N, H_out, W_out, Cout_padded) in out_dtype.
    shortcut: None | ("identity", xs) | ("proj", xs, ws, bns); xs is already on the
              output spatial grid (stride-subsampled by the caller for the 1x1 conv).
    """
    n = x.shape[0]
    kh, kw, cin, cout = w.shape
    cout_p = _round_up(cout, 128)
    tcout = 256 if cout_p % 256 == 0 else 128

    wf, bias = _fold_bn(w, bn, eps)
    bias = _pad_last(bias.reshape(1, cout), cout_p).astype(jnp.float32)

    # Small-Cin fast path: fold the taps into the contraction (one matmul at K=128)
    # instead of padding Cin to 128 for each of the kh*kw taps.
    fold_taps = kh * kw * cin <= 128

    if fold_taps:
        cin_p = _round_up(kh * kw * cin, 128)
        wk = wf.reshape(kh * kw * cin, cout)
        wk = jnp.pad(wk, ((0, cin_p - kh * kw * cin), (0, cout_p - cout)))
        wk = wk.astype(jnp.bfloat16).reshape(1, 1, cin_p, cout_p)
        xp, h_out, w_out = _im2col(x, kh, kw, stride, pad, cin, cin_p)
        kern_kh, kern_kw, kern_stride = 1, 1, 1
    else:
        cin_p = _round_up(max(cin, x.shape[-1]), 128)
        wk = _pad_last(wf, cout_p)
        wk = jnp.pad(wk, ((0, 0), (0, 0), (0, cin_p - cin), (0, 0))).astype(jnp.bfloat16)
        xp, h_out, w_out = _phase_split(_pad_last(x, cin_p).astype(jnp.bfloat16),
                                        kh, kw, stride, pad)
        kern_kh, kern_kw, kern_stride = kh, kw, stride
    s2, hpp, wpp = xp.shape[1], xp.shape[2], xp.shape[3]

    th = _pick_tile_h(h_out, w_out)
    tm = th * w_out
    # h tiles innermost: weight/bias blocks (depend only on cb) are fetched once per
    # (n, cout-tile); the image block (depends only on nb) is fetched once per n.
    grid = (n, cout_p // tcout, h_out // th)

    if fold_taps:
        # h-tiled patch block: normal double-buffered pipelining, no halo needed.
        xp_spec = pl.BlockSpec((1, 1, th, w_out, cin_p),
                               lambda nb, cb, hb: (nb, 0, hb, 0, 0))
        xp_resident = 2 * th * w_out * cin_p * 2
    else:
        # Whole phase-split image per batch element; single-buffered since its block
        # index only changes with n (double-buffering would just double VMEM residency).
        xp_spec = pl.BlockSpec((1, s2, hpp, wpp, cin_p),
                               lambda nb, cb, hb: (nb, 0, 0, 0, 0),
                               pipeline_mode=pl.Buffered(1))
        xp_resident = s2 * hpp * wpp * cin_p * 2

    in_specs = [
        xp_spec,
        pl.BlockSpec((kern_kh, kern_kw, cin_p, tcout), lambda nb, cb, hb: (0, 0, 0, cb)),
        pl.BlockSpec((1, tcout), lambda nb, cb, hb: (0, cb)),
    ]
    args = [xp, wk, bias]
    resident = (xp_resident + 2 * kern_kh * kern_kw * cin_p * tcout * 2
                + 2 * tcout * 4)

    mode = None
    if shortcut is not None:
        mode = shortcut[0]
        if mode == "proj":
            _, xs, ws, bns = shortcut
            scin = ws.shape[2]
            scin_p = _round_up(scin, 128)
            wsf, sbias = _fold_bn(ws, bns, eps)
            wsf = _pad_last(wsf.reshape(scin, cout), cout_p)
            wsf = jnp.pad(wsf, ((0, scin_p - scin), (0, 0))).astype(jnp.bfloat16)
            sbias = _pad_last(sbias.reshape(1, cout), cout_p).astype(jnp.float32)
            xs = _pad_last(xs[..., :scin], scin_p).astype(jnp.bfloat16)
            in_specs += [
                pl.BlockSpec((1, th, w_out, scin_p), lambda nb, cb, hb: (nb, hb, 0, 0)),
                pl.BlockSpec((scin_p, tcout), lambda nb, cb, hb: (0, cb)),
                pl.BlockSpec((1, tcout), lambda nb, cb, hb: (0, cb)),
            ]
            args += [xs, wsf, sbias]
            resident += 2 * (th * w_out * scin_p * 2 + scin_p * tcout * 2 + tcout * 4)
        else:  # identity: bf16 transport, upcast inside the kernel epilogue
            _, xs = shortcut
            xs = _pad_last(xs, cout_p).astype(jnp.bfloat16)
            in_specs.append(pl.BlockSpec((1, th, w_out, tcout),
                                         lambda nb, cb, hb: (nb, hb, 0, cb)))
            args.append(xs)
            resident += 2 * th * w_out * tcout * 2

    resident += 2 * tm * tcout * jnp.dtype(out_dtype).itemsize   # output tile (x2 buffers)
    resident += tm * tcout * 4                                   # f32 accumulator scratch
    vmem_limit = int(min(max(2 * resident, 32 << 20), 64 << 20))  # explicit, v7x-safe cap

    out = pl.pallas_call(
        _make_conv_kernel(kern_stride, relu, mode, whole_image_input=not fold_taps),
        out_shape=jax.ShapeDtypeStruct((n, h_out, w_out, cout_p), out_dtype),
        grid=grid,
        in_specs=in_specs,
        out_specs=pl.BlockSpec((1, th, w_out, tcout), lambda nb, cb, hb: (nb, hb, 0, cb)),
        scratch_shapes=[pltpu.VMEM((tm, tcout), jnp.float32)],
        compiler_params=pltpu.CompilerParams(
            dimension_semantics=("parallel", "parallel", "parallel"),
            vmem_limit_bytes=vmem_limit),
    )(*args)
    return out


@functools.partial(jax.jit, static_argnames=("stride", "res"))
def conv_block_forward(x, w1, bn1, w2, bn2, ws, bns, *, stride=1, res=True):
    """ConvBlock forward. x: (N, H, W, Cin) NHWC, returns (N, H_out, W_out, Cout) f32."""
    cin = x.shape[-1]
    cout = w1.shape[-1]

    # left: conv3x3(stride) -> BN -> ReLU   (bf16 intermediate, channel-padded)
    h = conv_bn_act(x, w1, bn1, stride=stride, pad=1, relu=True,
                    out_dtype=jnp.bfloat16)

    shortcut = None
    if res:
        if cin != cout:
            # 1x1 conv with stride s == 1x1 conv (stride 1) on the subsampled input.
            xs = x[:, ::stride, ::stride, :][:, :h.shape[1], :h.shape[2], :]
            shortcut = ("proj", xs, ws, bns)
        else:
            if stride != 1:
                raise ValueError("identity shortcut requires stride == 1 "
                                 "(same shape constraint as the PyTorch module)")
            shortcut = ("identity", x)

    # left tail: conv3x3(stride 1) -> BN, fused (+ shortcut) + ReLU
    out = conv_bn_act(h, w2, bn2, stride=1, pad=1, relu=True,
                      shortcut=shortcut, out_dtype=jnp.float32)
    # TODO(synk): keep the channel-padded output for downstream consumers to avoid
    #             this extra HBM slice pass.
    return out[..., :cout]


# ----------------------------- references (pure JAX) -----------------------------
def _ref_block_matched(x, w1, bn1, w2, bn2, ws, bns, stride, res):
    """Reference with the same precision choices (folded BN, bf16 matmul, f32 accum,
    bf16-transported identity residual)."""
    def conv(xx, ww, s, p):
        return lax.conv_general_dilated(
            xx.astype(jnp.bfloat16), ww.astype(jnp.bfloat16),
            window_strides=(s, s), padding=[(p, p), (p, p)],
            dimension_numbers=("NHWC", "HWIO", "NHWC"),
            preferred_element_type=jnp.float32)

    w1f, b1 = _fold_bn(w1, bn1)
    w2f, b2 = _fold_bn(w2, bn2)
    h = jax.nn.relu(conv(x, w1f, stride, 1) + b1)
    y = conv(h, w2f, 1, 1) + b2
    if res:
        if x.shape[-1] != w1.shape[-1]:
            wsf, bs = _fold_bn(ws, bns)
            y = y + conv(x, wsf, stride, 0) + bs
        else:
            y = y + x.astype(jnp.bfloat16).astype(jnp.float32)
    return jax.nn.relu(y)


def _ref_block_f32(x, w1, bn1, w2, bn2, ws, bns, stride, res):
    """Full-f32 semantic reference (standard conv + BN formula)."""
    def conv(xx, ww, s, p):
        return lax.conv_general_dilated(
            xx, ww, (s, s), [(p, p), (p, p)],
            dimension_numbers=("NHWC", "HWIO", "NHWC"))

    def bnorm(xx, bnp, eps=1e-5):
        g, b, m, v = bnp
        return (xx - m) / jnp.sqrt(v + eps) * g + b

    h = jax.nn.relu(bnorm(conv(x, w1, stride, 1), bn1))
    y = bnorm(conv(h, w2, 1, 1), bn2)
    if res:
        if x.shape[-1] != w1.shape[-1]:
            y = y + bnorm(conv(x, ws, stride, 0), bns)
        else:
            y = y + x
    return jax.nn.relu(y)


if __name__ == "__main__":
    key = jax.random.PRNGKey(0)

    def bn_params(k, c):
        ka, kb, kc, kd = jax.random.split(k, 4)
        gamma = 1.0 + 0.1 * jax.random.normal(ka, (c,), jnp.float32)
        beta = 0.1 * jax.random.normal(kb, (c,), jnp.float32)
        mean = 0.1 * jax.random.normal(kc, (c,), jnp.float32)
        var = jax.random.uniform(kd, (c,), jnp.float32, minval=0.5, maxval=1.5)
        return gamma, beta, mean, var

    configs = [
        # small-channel (im2col fast path) configs
        dict(name="proj_s1", N=2, Cin=4, Cout=8, H=16, W=16, stride=1, res=True),
        dict(name="identity_s1", N=2, Cin=8, Cout=8, H=16, W=16, stride=1, res=True),
        dict(name="proj_s2", N=2, Cin=4, Cout=8, H=16, W=16, stride=2, res=True),
        # full-channel (phase-split path) configs
        dict(name="identity_s1_c128", N=1, Cin=128, Cout=128, H=16, W=16, stride=1, res=True),
        dict(name="proj_s2_c128_256", N=1, Cin=128, Cout=256, H=16, W=16, stride=2, res=True),
    ]

    ok = True
    for cfg in configs:
        key, *ks = jax.random.split(key, 8)
        N, Cin, Cout = cfg["N"], cfg["Cin"], cfg["Cout"]
        H, W, stride, res = cfg["H"], cfg["W"], cfg["stride"], cfg["res"]

        # PyTorch-style NCHW input, transposed to NHWC for the kernels.
        x_nchw = jax.random.normal(ks[0], (N, Cin, H, W), jnp.float32)
        x = jnp.transpose(x_nchw, (0, 2, 3, 1))

        w1 = jax.random.normal(ks[1], (3, 3, Cin, Cout), jnp.float32) * (2.0 / (9 * Cin)) ** 0.5
        w2 = jax.random.normal(ks[2], (3, 3, Cout, Cout), jnp.float32) * (2.0 / (9 * Cout)) ** 0.5
        ws = jax.random.normal(ks[3], (1, 1, Cin, Cout), jnp.float32) * (2.0 / Cin) ** 0.5
        bn1 = bn_params(ks[4], Cout)
        bn2 = bn_params(ks[5], Cout)
        bns = bn_params(ks[6], Cout)

        out = conv_block_forward(x, w1, bn1, w2, bn2, ws, bns, stride=stride, res=res)
        out = jax.block_until_ready(out)

        ref_m = jax.block_until_ready(
            _ref_block_matched(x, w1, bn1, w2, bn2, ws, bns, stride, res))
        ref_f = jax.block_until_ready(
            _ref_block_f32(x, w1, bn1, w2, bn2, ws, bns, stride, res))

        H_out = (H + 2 - 3) // stride + 1
        err_m = float(jnp.max(jnp.abs(out - ref_m)))
        err_f = float(jnp.max(jnp.abs(out - ref_f)))
        shape_ok = out.shape == (N, H_out, H_out, Cout)
        if not shape_ok or err_m > 2e-2 or err_f > 2e-1:
            ok = False
            print(f"[{cfg['name']}] FAIL shape={out.shape} "
                  f"err_matched={err_m:.3e} err_f32={err_f:.3e}")

    if not ok:
        raise RuntimeError("mismatch")
    print("KERNEL_OK")
</pallas_src>

<mosaic_0001>
module attributes {stable_mosaic.version = 11 : i64} {
  func.func @kernel(%arg0: i32, %arg1: i32, %arg2: i32, %arg3: memref<1x1x16x16x128xbf16, #tpu.memory_space<vmem>>, %arg4: memref<1x1x128x128xbf16, #tpu.memory_space<vmem>>, %arg5: memref<1x128xf32, #tpu.memory_space<vmem>>, %arg6: memref<1x16x16x128xbf16, #tpu.memory_space<vmem>>, %arg7: memref<256x128xf32, #tpu.memory_space<vmem>>) attributes {dimension_semantics = [#tpu.dimension_semantics<parallel>, #tpu.dimension_semantics<parallel>, #tpu.dimension_semantics<parallel>], iteration_bounds = array<i64: 2, 1, 1>, scalar_prefetch = 0 : i64, scratch_operands = 1 : i64, tpu.core_type = #tpu.core_type<tc>, window_params = [{transform_indices = @transform_0, window_bounds = array<i64: 1, 1, 16, 16, 128>}, {transform_indices = @transform_1, window_bounds = array<i64: 1, 1, 128, 128>}, {transform_indices = @transform_2, window_bounds = array<i64: 1, 128>}, {transform_indices = @transform_3, window_bounds = array<i64: 1, 16, 16, 128>}]} {
    %c0 = arith.constant 0 : index
    %c0_0 = arith.constant 0 : index
    %c0_1 = arith.constant 0 : index
    %c0_2 = arith.constant 0 : index
    %c0_3 = arith.constant 0 : index
    %0 = vector.load %arg3[%c0, %c0_0, %c0_1, %c0_2, %c0_3] : memref<1x1x16x16x128xbf16, #tpu.memory_space<vmem>>, vector<1x1x16x16x128xbf16>
    %1 = vector.shape_cast %0 : vector<1x1x16x16x128xbf16> to vector<16x16x128xbf16>
    %2 = vector.shape_cast %1 : vector<16x16x128xbf16> to vector<256x128xbf16>
    %c0_4 = arith.constant 0 : index
    %c0_5 = arith.constant 0 : index
    %c0_6 = arith.constant 0 : index
    %c0_7 = arith.constant 0 : index
    %3 = vector.load %arg4[%c0_4, %c0_5, %c0_6, %c0_7] : memref<1x1x128x128xbf16, #tpu.memory_space<vmem>>, vector<1x1x128x128xbf16>
    %4 = vector.shape_cast %3 : vector<1x1x128x128xbf16> to vector<128x128xbf16>
    %cst = arith.constant dense<0.000000e+00> : vector<256x128xf32>
    %5 = tpu.matmul %2, %4, %cst {dimension_numbers = #tpu.dot_dimension_numbers<[1], [0], [0], [1], [0, 0, 1, 1], [], []>} : vector<256x128xbf16>, vector<128x128xbf16>, vector<256x128xf32> -> vector<256x128xf32>
    %c0_8 = arith.constant 0 : index
    %c0_9 = arith.constant 0 : index
    %6 = vector.load %arg7[%c0_8, %c0_9] : memref<256x128xf32, #tpu.memory_space<vmem>>, vector<256x128xf32>
    tpu.vector_store %arg7[%c0_8, %c0_9], %5 {strides = array<i32>} : memref<256x128xf32, #tpu.memory_space<vmem>>, vector<256x128xf32>,
    %c0_10 = arith.constant 0 : index
    %c0_11 = arith.constant 0 : index
    %7 = vector.load %arg7[%c0_10, %c0_11] : memref<256x128xf32, #tpu.memory_space<vmem>>, vector<256x128xf32>
    %c0_12 = arith.constant 0 : index
    %c0_13 = arith.constant 0 : index
    %8 = vector.load %arg5[%c0_12, %c0_13] : memref<1x128xf32, #tpu.memory_space<vmem>>, vector<1x128xf32>
    %9 = vector.broadcast %8 : vector<1x128xf32> to vector<256x128xf32>
    %10 = arith.addf %7, %9 : vector<256x128xf32>
    %cst_14 = arith.constant 0.000000e+00 : f32
    %11 = vector.broadcast %cst_14 : f32 to vector<256x128xf32>
    %12 = arith.maximumf %10, %11 : vector<256x128xf32>
    %13 = vector.shape_cast %12 : vector<256x128xf32> to vector<16x16x128xf32>
    %14 = arith.truncf %13 : vector<16x16x128xf32> to vector<16x16x128xbf16>
    %c0_15 = arith.constant 0 : index
    %c0_16 = arith.constant 0 : index
    %c0_17 = arith.constant 0 : index
    %c0_18 = arith.constant 0 : index
    %15 = vector.load %arg6[%c0_15, %c0_16, %c0_17, %c0_18] : memref<1x16x16x128xbf16, #tpu.memory_space<vmem>>, vector<1x16x16x128xbf16>
    %16 = vector.shape_cast %15 : vector<1x16x16x128xbf16> to vector<16x16x128xbf16>
    %17 = vector.shape_cast %14 : vector<16x16x128xbf16> to vector<1x16x16x128xbf16>
    tpu.vector_store %arg6[%c0_15, %c0_16, %c0_17, %c0_18], %17 {strides = array<i32>} : memref<1x16x16x128xbf16, #tpu.memory_space<vmem>>, vector<1x16x16x128xbf16>,
    return
  }
  func.func @transform_0(%arg0: i32, %arg1: i32, %arg2: i32) -> (i32, i32, i32, i32, i32) {
    %c0_i32 = arith.constant 0 : i32
    %c0_i32_0 = arith.constant 0 : i32
    %c0_i32_1 = arith.constant 0 : i32
    %c0_i32_2 = arith.constant 0 : i32
    return %arg0, %c0_i32, %arg2, %c0_i32_0, %c0_i32_1 : i32, i32, i32, i32, i32
  }
  func.func @transform_1(%arg0: i32, %arg1: i32, %arg2: i32) -> (i32, i32, i32, i32) {
    %c0_i32 = arith.constant 0 : i32
    %c0_i32_0 = arith.constant 0 : i32
    %c0_i32_1 = arith.constant 0 : i32
    %c0_i32_2 = arith.constant 0 : i32
    return %c0_i32, %c0_i32_0, %c0_i32_1, %arg1 : i32, i32, i32, i32
  }
  func.func @transform_2(%arg0: i32, %arg1: i32, %arg2: i32) -> (i32, i32) {
    %c0_i32 = arith.constant 0 : i32
    %c0_i32_0 = arith.constant 0 : i32
    return %c0_i32, %arg1 : i32, i32
  }
  func.func @transform_3(%arg0: i32, %arg1: i32, %arg2: i32) -> (i32, i32, i32, i32) {
    %c0_i32 = arith.constant 0 : i32
    %c0_i32_0 = arith.constant 0 : i32
    return %arg0, %arg2, %c0_i32, %arg1 : i32, i32, i32, i32
  }
}

module attributes {stable_mosaic.version = 11 : i64} {
  func.func @kernel(%arg0: i32, %arg1: i32, %arg2: i32, %arg3: memref<1x1x16x16x128xbf16, #tpu.memory_space<vmem>>, %arg4: memref<1x1x128x128xbf16, #tpu.memory_space<vmem>>, %arg5: memref<1x128xf32, #tpu.memory_space<vmem>>, %arg6: memref<1x16x16x128xbf16, #tpu.memory_space<vmem>>, %arg7: memref<128x128xbf16, #tpu.memory_space<vmem>>, %arg8: memref<1x128xf32, #tpu.memory_space<vmem>>, %arg9: memref<1x16x16x128xf32, #tpu.memory_space<vmem>>, %arg10: memref<256x128xf32, #tpu.memory_space<vmem>>) attributes {dimension_semantics = [#tpu.dimension_semantics<parallel>, #tpu.dimension_semantics<parallel>, #tpu.dimension_semantics<parallel>], iteration_bounds = array<i64: 2, 1, 1>, scalar_prefetch = 0 : i64, scratch_operands = 1 : i64, tpu.core_type = #tpu.core_type<tc>, window_params = [{transform_indices = @transform_0, window_bounds = array<i64: 1, 1, 16, 16, 128>}, {transform_indices = @transform_1, window_bounds = array<i64: 1, 1, 128, 128>}, {transform_indices = @transform_2, window_bounds = array<i64: 1, 128>}, {transform_indices = @transform_3, window_bounds = array<i64: 1, 16, 16, 128>}, {transform_indices = @transform_4, window_bounds = array<i64: 128, 128>}, {transform_indices = @transform_5, window_bounds = array<i64: 1, 128>}, {transform_indices = @transform_6, window_bounds = array<i64: 1, 16, 16, 128>}]} {
    %c0 = arith.constant 0 : index
    %c0_0 = arith.constant 0 : index
    %c0_1 = arith.constant 0 : index
    %c0_2 = arith.constant 0 : index
    %c0_3 = arith.constant 0 : index
    %0 = vector.load %arg3[%c0, %c0_0, %c0_1, %c0_2, %c0_3] : memref<1x1x16x16x128xbf16, #tpu.memory_space<vmem>>, vector<1x1x16x16x128xbf16>
    %1 = vector.shape_cast %0 : vector<1x1x16x16x128xbf16> to vector<16x16x128xbf16>
    %2 = vector.shape_cast %1 : vector<16x16x128xbf16> to vector<256x128xbf16>
    %c0_4 = arith.constant 0 : index
    %c0_5 = arith.constant 0 : index
    %c0_6 = arith.constant 0 : index
    %c0_7 = arith.constant 0 : index
    %3 = vector.load %arg4[%c0_4, %c0_5, %c0_6, %c0_7] : memref<1x1x128x128xbf16, #tpu.memory_space<vmem>>, vector<1x1x128x128xbf16>
    %4 = vector.shape_cast %3 : vector<1x1x128x128xbf16> to vector<128x128xbf16>
    %cst = arith.constant dense<0.000000e+00> : vector<256x128xf32>
    %5 = tpu.matmul %2, %4, %cst {dimension_numbers = #tpu.dot_dimension_numbers<[1], [0], [0], [1], [0, 0, 1, 1], [], []>} : vector<256x128xbf16>, vector<128x128xbf16>, vector<256x128xf32> -> vector<256x128xf32>
    %c0_8 = arith.constant 0 : index
    %c0_9 = arith.constant 0 : index
    %6 = vector.load %arg10[%c0_8, %c0_9] : memref<256x128xf32, #tpu.memory_space<vmem>>, vector<256x128xf32>
    tpu.vector_store %arg10[%c0_8, %c0_9], %5 {strides = array<i32>} : memref<256x128xf32, #tpu.memory_space<vmem>>, vector<256x128xf32>,
    %c0_10 = arith.constant 0 : index
    %c0_11 = arith.constant 0 : index
    %7 = vector.load %arg10[%c0_10, %c0_11] : memref<256x128xf32, #tpu.memory_space<vmem>>, vector<256x128xf32>
    %c0_12 = arith.constant 0 : index
    %c0_13 = arith.constant 0 : index
    %8 = vector.load %arg5[%c0_12, %c0_13] : memref<1x128xf32, #tpu.memory_space<vmem>>, vector<1x128xf32>
    %9 = vector.broadcast %8 : vector<1x128xf32> to vector<256x128xf32>
    %10 = arith.addf %7, %9 : vector<256x128xf32>
    %c0_14 = arith.constant 0 : index
    %c0_15 = arith.constant 0 : index
    %c0_16 = arith.constant 0 : index
    %c0_17 = arith.constant 0 : index
    %11 = vector.load %arg6[%c0_14, %c0_15, %c0_16, %c0_17] : memref<1x16x16x128xbf16, #tpu.memory_space<vmem>>, vector<1x16x16x128xbf16>
    %12 = vector.shape_cast %11 : vector<1x16x16x128xbf16> to vector<16x16x128xbf16>
    %13 = vector.shape_cast %12 : vector<16x16x128xbf16> to vector<256x128xbf16>
    %c0_18 = arith.constant 0 : index
    %c0_19 = arith.constant 0 : index
    %14 = vector.load %arg7[%c0_18, %c0_19] : memref<128x128xbf16, #tpu.memory_space<vmem>>, vector<128x128xbf16>
    %cst_20 = arith.constant dense<0.000000e+00> : vector<256x128xf32>
    %15 = tpu.matmul %13, %14, %cst_20 {dimension_numbers = #tpu.dot_dimension_numbers<[1], [0], [0], [1], [0, 0, 1, 1], [], []>} : vector<256x128xbf16>, vector<128x128xbf16>, vector<256x128xf32> -> vector<256x128xf32>
    %16 = arith.addf %10, %15 : vector<256x128xf32>
    %c0_21 = arith.constant 0 : index
    %c0_22 = arith.constant 0 : index
    %17 = vector.load %arg8[%c0_21, %c0_22] : memref<1x128xf32, #tpu.memory_space<vmem>>, vector<1x128xf32>
    %18 = vector.broadcast %17 : vector<1x128xf32> to vector<256x128xf32>
    %19 = arith.addf %16, %18 : vector<256x128xf32>
    %cst_23 = arith.constant 0.000000e+00 : f32
    %20 = vector.broadcast %cst_23 : f32 to vector<256x128xf32>
    %21 = arith.maximumf %19, %20 : vector<256x128xf32>
    %22 = vector.shape_cast %21 : vector<256x128xf32> to vector<16x16x128xf32>
    %c0_24 = arith.constant 0 : index
    %c0_25 = arith.constant 0 : index
    %c0_26 = arith.constant 0 : index
    %c0_27 = arith.constant 0 : index
    %23 = vector.load %arg9[%c0_24, %c0_25, %c0_26, %c0_27] : memref<1x16x16x128xf32, #tpu.memory_space<vmem>>, vector<1x16x16x128xf32>
    %24 = vector.shape_cast %23 : vector<1x16x16x128xf32> to vector<16x16x128xf32>
    %25 = vector.shape_cast %22 : vector<16x16x128xf32> to vector<1x16x16x128xf32>
    tpu.vector_store %arg9[%c0_24, %c0_25, %c0_26, %c0_27], %25 {strides = array<i32>} : memref<1x16x16x128xf32, #tpu.memory_space<vmem>>, vector<1x16x16x128xf32>,
    return
  }
  func.func @transform_0(%arg0: i32, %arg1: i32, %arg2: i32) -> (i32, i32, i32, i32, i32) {
    %c0_i32 = arith.constant 0 : i32
    %c0_i32_0 = arith.constant 0 : i32
    %c0_i32_1 = arith.constant 0 : i32
    %c0_i32_2 = arith.constant 0 : i32
    return %arg0, %c0_i32, %arg2, %c0_i32_0, %c0_i32_1 : i32, i32, i32, i32, i32
  }
  func.func @transform_1(%arg0: i32, %arg1: i32, %arg2: i32) -> (i32, i32, i32, i32) {
    %c0_i32 = arith.constant 0 : i32
    %c0_i32_0 = arith.constant 0 : i32
    %c0_i32_1 = arith.constant 0 : i32
    %c0_i32_2 = arith.constant 0 : i32
    return %c0_i32, %c0_i32_0, %c0_i32_1, %arg1 : i32, i32, i32, i32
  }
  func.func @transform_2(%arg0: i32, %arg1: i32, %arg2: i32) -> (i32, i32) {
    %c0_i32 = arith.constant 0 : i32
    %c0_i32_0 = arith.constant 0 : i32
    return %c0_i32, %arg1 : i32, i32
  }
  func.func @transform_3(%arg0: i32, %arg1: i32, %arg2: i32) -> (i32, i32, i32, i32) {
    %c0_i32 = arith.constant 0 : i32
    %c0_i32_0 = arith.constant 0 : i32
    %c0_i32_1 = arith.constant 0 : i32
    return %arg0, %arg2, %c0_i32, %c0_i32_0 : i32, i32, i32, i32
  }
  func.func @transform_4(%arg0: i32, %arg1: i32, %arg2: i32) -> (i32, i32) {
    %c0_i32 = arith.constant 0 : i32
    %c0_i32_0 = arith.constant 0 : i32
    return %c0_i32, %arg1 : i32, i32
  }
  func.func @transform_5(%arg0: i32, %arg1: i32, %arg2: i32) -> (i32, i32) {
    %c0_i32 = arith.constant 0 : i32
    %c0_i32_0 = arith.constant 0 : i32
    return %c0_i32, %arg1 : i32, i32
  }
  func.func @transform_6(%arg0: i32, %arg1: i32, %arg2: i32) -> (i32, i32, i32, i32) {
    %c0_i32 = arith.constant 0 : i32
    %c0_i32_0 = arith.constant 0 : i32
    return %arg0, %arg2, %c0_i32, %arg1 : i32, i32, i32, i32
  }
}

</mosaic_0001>

<llo_original>
// kernel: conv_block_forward.2
$region0: #{conv_block_forward.2}
  #allocation0 [shape = 'u32[]', space=smem, size = 0x4, offset = 0x4, fixed_abs, tag = 'smem constant byte address 0x4 - core index']
  #allocation1 [shape = 'u32[144,128]{1,0:T(1,128)}', space=vmem, size = 0x12000, scoped, tag = 'internal scratch']
  #allocation2 [shape = 'f32[256,128]{1,0:T(8,128)}', space=vmem, size = 0x20000, scoped, tag = 'scratch operand']
  %s0 = inlined_call_operand.vmem [shape: bf16[2,1,16,16,128], index: 0, kind: input, shape index: {}]
  %s1 = inlined_call_operand.vmem [shape: bf16[1,1,128,128], index: 1, kind: input, shape index: {}]
  %s2 = inlined_call_operand.vmem [shape: f32[1,128], index: 2, kind: input, shape index: {}]
  %s3 = inlined_call_operand.vmem [shape: bf16[2,16,16,128], index: 3, kind: output, shape index: {}]
  %s4 = sld [smem:[#allocation0]]
  $region45: #{conv_block_forward.2} parent=0
    _
  %s6 = ssub.s32 1, %s4
  %s7 = scalar_select 0, %s6, %s4
  loop: start=0, step=1, limit=4
  $region2: #{conv_block_forward.2} parent=0 // loop_pre_header
    _
  $region3: #{conv_block_forward.2} parent=0 // loop_header
    %s9 = sphi 0, %s13
    %p10 = scmp.ge.s32.totalorder %s9, 4
    %s16 = sphi 0, %s35
    %s17 = sphi 0, %s31
    %s18 = sphi 0, %s27
    %s19 = sphi 0, %s16
    %s20 = sphi 0, %s17
    %s21 = sphi 0, %s18
    %s22 = sphi 0, %s19
    %s23 = sphi 0, %s20
    %s24 = sphi 0, %s21
    %s40 = sphi 0, %s42
    %s43 = sphi 0, %s40
    %s44 = sphi 0, %s43
    %s60 = sphi 0, %s44
    %s66 = sphi 0, %s68
    %s69 = sphi 0, %s66
    %s70 = sphi 0, %s69
    %s86 = sphi 0, %s70
    %s92 = sphi 0, %s94
    %s95 = sphi 0, %s92
    %s96 = sphi 0, %s95
    %s112 = sphi 0, %s96
    %s122 = sphi 0, %s124
    %s125 = sphi 0, %s122
    %s126 = sphi 0, %s125
    %s142 = sphi 0, %s126
  $region4: #{conv_block_forward.2} parent=0 // loop_header_branch
    %12 = sbr.rel (%p10) target = $region8
  $region5: #{conv_block_forward.2} parent=0 // loop_body
    %s14 = ssub.s32 %s9, 1
    %s15 = ssub.s32 %s9, 2
    %s25 = sadd.s32 1, %s18
    %p26 = scmp.ge.s32.totalorder %s25, 1
    %s27 = scalar_select %p26, 0, %s25
    %s28 = sadd.s32 1, %s17
    %s29 = scalar_select %p26, %s28, %s17
    %p30 = scmp.ge.s32.totalorder %s29, 1
    %s31 = scalar_select %p30, 0, %s29
    %s32 = sadd.s32 1, %s16
    %s33 = scalar_select %p30, %s32, %s16
    %p34 = scmp.ge.s32.totalorder %s33, 2
    %s35 = scalar_select %p34, 0, %s33
    %s36 = ssub.s32 %s16, %s35
    %s37 = ssub.s32 %s18, %s27
    %s38 = sor.u32 %s36, %s37
    %p39 = scmp.eq.s32.totalorder %s38, 0
    %s41 = sadd.s32 %s40, 1
    %s42 = scalar_select %p39, %s40, %s41
    %p45 = pneg %p39
    %p46 = scmp.eq.s32.totalorder %s9, 1
    %p47 = por %p45, %p46
    %p48 = scmp.ne.s32.totalorder %s40, %s43
    %p49 = scmp.eq.s32.totalorder %s9, 0
    %p50 = por %p48, %p49
    %p51 = scmp.ne.s32.totalorder %s40, %s43
    %p52 = scmp.eq.s32.totalorder %s14, 1
    %p53 = por %p51, %p52
    %p54 = scmp.ne.s32.totalorder %s43, %s44
    %p55 = scmp.eq.s32.totalorder %s14, 0
    %p56 = por %p54, %p55
    %p57 = scmp.ne.s32.totalorder %s43, %s44
    %p58 = scmp.eq.s32.totalorder %s15, 1
    %p59 = por %p57, %p58
    %p61 = scmp.ne.s32.totalorder %s44, %s60
    %p62 = scmp.eq.s32.totalorder %s15, 0
    %p63 = por %p61, %p62
    %s64 = ssub.s32 %s17, %s31
    %p65 = scmp.eq.s32.totalorder %s64, 0
    %s67 = sadd.s32 %s66, 1
    %s68 = scalar_select %p65, %s66, %s67
    %p71 = pneg %p65
    %p72 = scmp.eq.s32.totalorder %s9, 1
    %p73 = por %p71, %p72
    %p74 = scmp.ne.s32.totalorder %s66, %s69
    %p75 = scmp.eq.s32.totalorder %s9, 0
    %p76 = por %p74, %p75
    %p77 = scmp.ne.s32.totalorder %s66, %s69
    %p78 = scmp.eq.s32.totalorder %s14, 1
    %p79 = por %p77, %p78
    %p80 = scmp.ne.s32.totalorder %s69, %s70
    %p81 = scmp.eq.s32.totalorder %s14, 0
    %p82 = por %p80, %p81
    %p83 = scmp.ne.s32.totalorder %s69, %s70
    %p84 = scmp.eq.s32.totalorder %s15, 1
    %p85 = por %p83, %p84
    %p87 = scmp.ne.s32.totalorder %s70, %s86
    %p88 = scmp.eq.s32.totalorder %s15, 0
    %p89 = por %p87, %p88
    %s90 = ssub.s32 %s17, %s31
    %p91 = scmp.eq.s32.totalorder %s90, 0
    %s93 = sadd.s32 %s92, 1
    %s94 = scalar_select %p91, %s92, %s93
    %p97 = pneg %p91
    %p98 = scmp.eq.s32.totalorder %s9, 1
    %p99 = por %p97, %p98
    %p100 = scmp.ne.s32.totalorder %s92, %s95
    %p101 = scmp.eq.s32.totalorder %s9, 0
    %p102 = por %p100, %p101
    %p103 = scmp.ne.s32.totalorder %s92, %s95
    %p104 = scmp.eq.s32.totalorder %s14, 1
    %p105 = por %p103, %p104
    %p106 = scmp.ne.s32.totalorder %s95, %s96
    %p107 = scmp.eq.s32.totalorder %s14, 0
    %p108 = por %p106, %p107
    %p109 = scmp.ne.s32.totalorder %s95, %s96
    %p110 = scmp.eq.s32.totalorder %s15, 1
    %p111 = por %p109, %p110
    %p113 = scmp.ne.s32.totalorder %s96, %s112
    %p114 = scmp.eq.s32.totalorder %s15, 0
    %p115 = por %p113, %p114
    %s116 = ssub.s32 %s16, %s35
    %s117 = ssub.s32 %s18, %s27
    %s118 = sor.u32 %s116, %s117
    %s119 = ssub.s32 %s17, %s31
    %s120 = sor.u32 %s118, %s119
    %p121 = scmp.eq.s32.totalorder %s120, 0
    %s123 = sadd.s32 %s122, 1
    %s124 = scalar_select %p121, %s122, %s123
    %p127 = pneg %p121
    %p128 = scmp.eq.s32.totalorder %s9, 1
    %p129 = por %p127, %p128
    %p130 = scmp.ne.s32.totalorder %s122, %s125
    %p131 = scmp.eq.s32.totalorder %s9, 0
    %p132 = por %p130, %p131
    %p133 = scmp.ne.s32.totalorder %s122, %s125
    %p134 = scmp.eq.s32.totalorder %s14, 1
    %p135 = por %p133, %p134
    %p136 = scmp.ne.s32.totalorder %s125, %s126
    %p137 = scmp.eq.s32.totalorder %s14, 0
    %p138 = por %p136, %p137
    %p139 = scmp.ne.s32.totalorder %s125, %s126
    %p140 = scmp.eq.s32.totalorder %s15, 1
    %p141 = por %p139, %p140
    %p143 = scmp.ne.s32.totalorder %s126, %s142
    %p144 = scmp.eq.s32.totalorder %s15, 0
    %p145 = por %p143, %p144
    %p146 = scmp.le.s32.totalorder 1, %s9
    %p147 = scmp.lt.s32.totalorder %s9, 3
    %p148 = pnand %p146, %p147
    %p149 = pneg %p148
    // Predicated region
    $region9: #{conv_block_forward.2} parent=5 // pred_check
      _
    $region10: #{conv_block_forward.2} parent=5 // pred_check_branch
      %151 = sbr.rel (%p148) target = $region12
    $region11: #{conv_block_forward.2} parent=5 // pred_region
      %s152 = ssub.s32 %s9, 1
      // Predicated region
      $region13: #{conv_block_forward.2} parent=11 // pred_check
        %p153 = pneg %p82
      $region14: #{conv_block_forward.2} parent=11 // pred_check_branch
        %155 = sbr.rel (%p153) target = $region16
      $region15: #{conv_block_forward.2} parent=11 // pred_region
        %p156 = scmp.lt.s32.totalorder %s20, 0
        %s157 = scalar_select %p156, %s20, 0
        %s158 = smul.addr %s157, 4
        %s159 = scalar_lea.vmem %s1, %s158
      $region16: #{conv_block_forward.2} parent=11 // pred_fallthru
        _
      // Predicated region
      $region17: #{conv_block_forward.2} parent=11 // pred_check
        %p160 = pneg %p108
      $region18: #{conv_block_forward.2} parent=11 // pred_check_branch
        %162 = sbr.rel (%p160) target = $region20
      $region19: #{conv_block_forward.2} parent=11 // pred_region
        %p163 = scmp.lt.s32.totalorder %s20, 0
        %s164 = scalar_select %p163, %s20, 0
        %s165 = scalar_lea.vmem %s2, %s164
      $region20: #{conv_block_forward.2} parent=11 // pred_fallthru
        _
    $region12: #{conv_block_forward.2} parent=5 // pred_fallthru
      _
    %p166 = scmp.lt.s32.totalorder %s9, 2
    // Predicated region
    $region21: #{conv_block_forward.2} parent=5 // pred_check
      %p167 = pneg %p166
    $region22: #{conv_block_forward.2} parent=5 // pred_check_branch
      %169 = sbr.rel (%p167) target = $region24
    $region23: #{conv_block_forward.2} parent=5 // pred_region
      // Predicated region
      $region25: #{conv_block_forward.2} parent=23 // pred_check
        %p170 = pneg %p50
      $region26: #{conv_block_forward.2} parent=23 // pred_check_branch
        %172 = sbr.rel (%p170) target = $region28
      $region27: #{conv_block_forward.2} parent=23 // pred_region
        %s173 = smul.u32 16, %s18
        %p174 = scmp.lt.s32.totalorder %s16, 1
        %s175 = scalar_select %p174, %s16, 1
        %p176 = scmp.lt.s32.totalorder %s173, 15
        %s177 = scalar_select %p176, %s173, 15
        %s178 = smul.addr %s177, 2
        %s179 = smul.addr %s175, 32
        %s180 = sadd.s32 %s178, %s179
        %s181 = smul.addr %s180, 4
        %s182 = scalar_lea.vmem %s0, %s181
        %s183 = smul.u32 16, %s18
      $region28: #{conv_block_forward.2} parent=23 // pred_fallthru
        _
    $region24: #{conv_block_forward.2} parent=5 // pred_fallthru
      _
    %p184 = scmp.le.s32.totalorder 1, %s9
    %p185 = scmp.lt.s32.totalorder %s9, 3
    %p186 = pnand %p184, %p185
    %p187 = pneg %p186
    // Predicated region
    $region29: #{conv_block_forward.2} parent=5 // pred_check
      _
    $region30: #{conv_block_forward.2} parent=5 // pred_check_branch
      %189 = sbr.rel (%p186) target = $region32
    $region31: #{conv_block_forward.2} parent=5 // pred_region
      %s190 = ssub.s32 %s9, 1
      %s191 = smul.u32 16, %s21
      %p192 = scmp.lt.s32.totalorder %s19, 1
      %s193 = scalar_select %p192, %s19, 1
      %p194 = scmp.lt.s32.totalorder %s191, 15
      %s195 = scalar_select %p194, %s191, 15
      %s196 = smul.addr %s195, 2
      %s197 = smul.addr %s193, 32
      %s198 = sadd.s32 %s196, %s197
      %s199 = smul.addr %s198, 4
      %s200 = scalar_lea.vmem %s0, %s199
      %p201 = pneg %p56
      %p202 = pneg %p53
      %p203 = scmp.lt.s32.totalorder %s20, 0
      %s204 = scalar_select %p203, %s20, 0
      %s205 = smul.addr %s204, 4
      %s206 = scalar_lea.vmem %s1, %s205
      %p207 = pneg %p82
      %p208 = pneg %p79
      %p209 = scmp.lt.s32.totalorder %s20, 0
      %s210 = scalar_select %p209, %s20, 0
      %s211 = scalar_lea.vmem %s2, %s210
      %p212 = pneg %p108
      %p213 = pneg %p105
      %p214 = pneg %p138
      %p215 = pneg %p135
      %s216 = smul.u32 16, %s21
      %p217 = scmp.lt.s32.totalorder %s19, 1
      %s218 = scalar_select %p217, %s19, 1
      %p219 = scmp.lt.s32.totalorder %s216, 15
      %s220 = scalar_select %p219, %s216, 15
      %p221 = scmp.lt.s32.totalorder %s20, 0
      %s222 = scalar_select %p221, %s20, 0
      %s223 = smul.addr %s220, 2
      %s224 = sadd.s32 %s222, %s223
      %s225 = smul.addr %s218, 32
      %s226 = sadd.s32 %s224, %s225
      %s227 = smul.addr %s226, 4
      %s228 = scalar_lea.vmem %s3, %s227
      %s229 = smul.u32 16, %s21
      %p230 = scmp.lt.s32.totalorder %s19, 1
      %s231 = scalar_select %p230, %s19, 1
      %p232 = scmp.lt.s32.totalorder %s229, 15
      %s233 = scalar_select %p232, %s229, 15
      %s234 = smul.addr %s233, 2
      %s235 = smul.addr %s231, 32
      %s236 = sadd.s32 %s234, %s235
      %s237 = smul.addr %s236, 4
      %s238 = scalar_lea.vmem %s0, %s237
      %s239 = smul.u32 16, %s21
      %p240 = scmp.lt.s32.totalorder %s20, 0
      %s241 = scalar_select %p240, %s20, 0
      %s242 = smul.addr %s241, 4
      %s243 = scalar_lea.vmem %s1, %s242
      %p244 = scmp.lt.s32.totalorder %s20, 0
      %s245 = scalar_select %p244, %s20, 0
      %s246 = scalar_lea.vmem %s2, %s245
      %s247 = smul.u32 16, %s21
      %p248 = scmp.lt.s32.totalorder %s19, 1
      %s249 = scalar_select %p248, %s19, 1
      %p250 = scmp.lt.s32.totalorder %s247, 15
      %s251 = scalar_select %p250, %s247, 15
      %p252 = scmp.lt.s32.totalorder %s20, 0
      %s253 = scalar_select %p252, %s20, 0
      %s254 = smul.addr %s251, 2
      %s255 = sadd.s32 %s253, %s254
      %s256 = smul.addr %s249, 32
      %s257 = sadd.s32 %s255, %s256
      %s258 = smul.addr %s257, 4
      %s259 = scalar_lea.vmem %s3, %s258
      %s260 = smul.u32 16, %s21
      %v262 = vld [vmem:[%s238] sm:$0xf]
      %v263 = vld [vmem:[%s238 + $0x4] sm:$0xf]
      %v264 = vld [vmem:[%s238 + $0x8] sm:$0xf]
      %v265 = vld [vmem:[%s238 + $0xc] sm:$0xf]
      %v266 = vld [vmem:[%s238 + $0x10] sm:$0xf]
      %v267 = vld [vmem:[%s238 + $0x14] sm:$0xf]
      %v268 = vld [vmem:[%s238 + $0x18] sm:$0xf]
      %v269 = vld [vmem:[%s238 + $0x1c] sm:$0xf]
      %v270 = vld [vmem:[%s238 + $0x20] sm:$0xf]
      %v271 = vld [vmem:[%s238 + $0x24] sm:$0xf]
      %v272 = vld [vmem:[%s238 + $0x28] sm:$0xf]
      %v273 = vld [vmem:[%s238 + $0x2c] sm:$0xf]
      %v274 = vld [vmem:[%s238 + $0x30] sm:$0xf]
      %v275 = vld [vmem:[%s238 + $0x34] sm:$0xf]
      %v276 = vld [vmem:[%s238 + $0x38] sm:$0xf]
      %v277 = vld [vmem:[%s238 + $0x3c] sm:$0xf]
      %v278 = vld [vmem:[%s238 + $0x40] sm:$0xf]
      %v279 = vld [vmem:[%s238 + $0x44] sm:$0xf]
      %v280 = vld [vmem:[%s238 + $0x48] sm:$0xf]
      %v281 = vld [vmem:[%s238 + $0x4c] sm:$0xf]
      %v282 = vld [vmem:[%s238 + $0x50] sm:$0xf]
      %v283 = vld [vmem:[%s238 + $0x54] sm:$0xf]
      %v284 = vld [vmem:[%s238 + $0x58] sm:$0xf]
      %v285 = vld [vmem:[%s238 + $0x5c] sm:$0xf]
      %v286 = vld [vmem:[%s238 + $0x60] sm:$0xf]
      %v287 = vld [vmem:[%s238 + $0x64] sm:$0xf]
      %v288 = vld [vmem:[%s238 + $0x68] sm:$0xf]
      %v289 = vld [vmem:[%s238 + $0x6c] sm:$0xf]
      %v290 = vld [vmem:[%s238 + $0x70] sm:$0xf]
      %v291 = vld [vmem:[%s238 + $0x74] sm:$0xf]
      %v292 = vld [vmem:[%s238 + $0x78] sm:$0xf]
      %v293 = vld [vmem:[%s238 + $0x7c] sm:$0xf]
      %v294 = vld [vmem:[%s243] sm:$0xf]
      %v295 = vld [vmem:[%s243 + $0x4] sm:$0xf]
      %v296 = vld [vmem:[%s243 + $0x8] sm:$0xf]
      %v297 = vld [vmem:[%s243 + $0xc] sm:$0xf]
      %v298 = vld [vmem:[%s243 + $0x10] sm:$0xf]
      %v299 = vld [vmem:[%s243 + $0x14] sm:$0xf]
      %v300 = vld [vmem:[%s243 + $0x18] sm:$0xf]
      %v301 = vld [vmem:[%s243 + $0x1c] sm:$0xf]
      %v302 = vld [vmem:[%s243 + $0x20] sm:$0xf]
      %v303 = vld [vmem:[%s243 + $0x24] sm:$0xf]
      %v304 = vld [vmem:[%s243 + $0x28] sm:$0xf]
      %v305 = vld [vmem:[%s243 + $0x2c] sm:$0xf]
      %v306 = vld [vmem:[%s243 + $0x30] sm:$0xf]
      %v307 = vld [vmem:[%s243 + $0x34] sm:$0xf]
      %v308 = vld [vmem:[%s243 + $0x38] sm:$0xf]
      %v309 = vld [vmem:[%s243 + $0x3c] sm:$0xf]
      %v342 = vunpack.c.l.b16 %v262
      %v343 = vunpack.c.l.b16 %v263
      %v344 = vunpack.c.l.b16 %v264
      %v345 = vunpack.c.l.b16 %v265
      %v346 = vunpack.c.l.b16 %v266
      %v347 = vunpack.c.l.b16 %v267
      %v348 = vunpack.c.l.b16 %v268
      %v349 = vunpack.c.l.b16 %v269
      %v350 = vunpack.c.l.b16 %v270
      %v351 = vunpack.c.l.b16 %v271
      %v352 = vunpack.c.l.b16 %v272
      %v353 = vunpack.c.l.b16 %v273
      %v354 = vunpack.c.l.b16 %v274
      %v355 = vunpack.c.l.b16 %v275
      %v356 = vunpack.c.l.b16 %v276
      %v357 = vunpack.c.l.b16 %v277
      %v358 = vunpack.c.l.b16 %v278
      %v359 = vunpack.c.l.b16 %v279
      %v360 = vunpack.c.l.b16 %v280
      %v361 = vunpack.c.l.b16 %v281
      %v362 = vunpack.c.l.b16 %v282
      %v363 = vunpack.c.l.b16 %v283
      %v364 = vunpack.c.l.b16 %v284
      %v365 = vunpack.c.l.b16 %v285
      %v366 = vunpack.c.l.b16 %v286
      %v367 = vunpack.c.l.b16 %v287
      %v368 = vunpack.c.l.b16 %v288
      %v369 = vunpack.c.l.b16 %v289
      %v370 = vunpack.c.l.b16 %v290
      %v371 = vunpack.c.l.b16 %v291
      %v372 = vunpack.c.l.b16 %v292
      %v373 = vunpack.c.l.b16 %v293
      %v374 = vpack.c.b16 %v343, %v342
      %v375 = vpack.c.b16 %v345, %v344
      %v376 = vpack.c.b16 %v347, %v346
      %v377 = vpack.c.b16 %v349, %v348
      %v378 = vpack.c.b16 %v351, %v350
      %v379 = vpack.c.b16 %v353, %v352
      %v380 = vpack.c.b16 %v355, %v354
      %v381 = vpack.c.b16 %v357, %v356
      %v382 = vpack.c.b16 %v359, %v358
      %v383 = vpack.c.b16 %v361, %v360
      %v384 = vpack.c.b16 %v363, %v362
      %v385 = vpack.c.b16 %v365, %v364
      %v386 = vpack.c.b16 %v367, %v366
      %v387 = vpack.c.b16 %v369, %v368
      %v388 = vpack.c.b16 %v371, %v370
      %v389 = vpack.c.b16 %v373, %v372
      %v422 = vunpack.c.l.b16 %v294
      %v423 = vunpack.c.l.b16 %v295
      %v424 = vunpack.c.l.b16 %v296
      %v425 = vunpack.c.l.b16 %v297
      %v426 = vunpack.c.l.b16 %v298
      %v427 = vunpack.c.l.b16 %v299
      %v428 = vunpack.c.l.b16 %v300
      %v429 = vunpack.c.l.b16 %v301
      %v430 = vunpack.c.l.b16 %v302
      %v431 = vunpack.c.l.b16 %v303
      %v432 = vunpack.c.l.b16 %v304
      %v433 = vunpack.c.l.b16 %v305
      %v434 = vunpack.c.l.b16 %v306
      %v435 = vunpack.c.l.b16 %v307
      %v436 = vunpack.c.l.b16 %v308
      %v437 = vunpack.c.l.b16 %v309
      %v438 = vpack.c.b16 %v423, %v422
      %v439 = vpack.c.b16 %v425, %v424
      %v440 = vpack.c.b16 %v427, %v426
      %v441 = vpack.c.b16 %v429, %v428
      %v442 = vpack.c.b16 %v431, %v430
      %v443 = vpack.c.b16 %v433, %v432
      %v444 = vpack.c.b16 %v435, %v434
      %v445 = vpack.c.b16 %v437, %v436
      %454 = vmatprep.subr.bf16.mxu0 0
      %455 = vmatpush1.bf16.msra.mxu0 %v445
      %456 = vmatprep.subr.bf16.mxu0 0
      %457 = vmatpush1.bf16.msra.mxu0 %v444
      %458 = vmatprep.subr.bf16.mxu0 0
      %459 = vmatpush1.bf16.msra.mxu0 %v443
      %460 = vmatprep.subr.bf16.mxu0 0
      %461 = vmatpush1.bf16.msra.mxu0 %v442
      %462 = vmatprep.subr.bf16.mxu0 0
      %463 = vmatpush1.bf16.msra.mxu0 %v441
      %464 = vmatprep.subr.bf16.mxu0 0
      %465 = vmatpush1.bf16.msra.mxu0 %v440
      %466 = vmatprep.subr.bf16.mxu0 0
      %467 = vmatpush1.bf16.msra.mxu0 %v439
      %468 = vmatprep.subr.bf16.mxu0 0
      %469 = vmatpush1.bf16.msra.mxu0 %v438
      %470 = vmatprep.subr.bf16.mxu0 0
      %471 = vmatpush2.bf16.msra.mxu0 0
      %472 = vmatprep.subr.bf16.mxu0 0
      %473 = vmatpush2.bf16.msra.mxu0 0
      %474 = vmatprep.subr.bf16.mxu0 0
      %475 = vmatpush2.bf16.msra.mxu0 0
      %476 = vmatprep.subr.bf16.mxu0 0
      %477 = vmatpush2.bf16.msra.mxu0 0
      %478 = vmatprep.subr.bf16.mxu0 0
      %479 = vmatpush2.bf16.msra.mxu0 0
      %480 = vmatprep.subr.bf16.mxu0 0
      %481 = vmatpush2.bf16.msra.mxu0 0
      %482 = vmatprep.subr.bf16.mxu0 0
      %483 = vmatpush2.bf16.msra.mxu0 0
      %484 = vmatprep.subr.bf16.mxu0 0
      %485 = vmatpush2.bf16.msra.mxu0 0
      %486 = vmatprep.mubr.bf16.mxu0 0
      %487 = vmatmul.mubr.bf16.gmra.mxu0 %v374
      %v488 = vpop.f32.mrf.mxu0
      %v489 = vadd.f32 0.0, %v488
      %v490 = vpop.f32.mrf.mxu0
      %v491 = vpop.f32.mrf.mxu0
      %v492 = vadd.f32 0.0, %v491
      %v493 = vpop.f32.mrf.mxu0
      %494 = vmatprep.mubr.bf16.mxu0 0
      %495 = vmatmul.mubr.bf16.gmra.mxu0 %v375
      %v496 = vpop.f32.mrf.mxu0
      %v497 = vadd.f32 0.0, %v496
      %v498 = vpop.f32.mrf.mxu0
      %v499 = vpop.f32.mrf.mxu0
      %v500 = vadd.f32 0.0, %v499
      %v501 = vpop.f32.mrf.mxu0
      %502 = vmatprep.mubr.bf16.mxu0 0
      %503 = vmatmul.mubr.bf16.gmra.mxu0 %v376
      %v504 = vpop.f32.mrf.mxu0
      %v505 = vadd.f32 0.0, %v504
      %v506 = vpop.f32.mrf.mxu0
      %v507 = vpop.f32.mrf.mxu0
      %v508 = vadd.f32 0.0, %v507
      %v509 = vpop.f32.mrf.mxu0
      %510 = vmatprep.mubr.bf16.mxu0 0
      %511 = vmatmul.mubr.bf16.gmra.mxu0 %v377
      %v512 = vpop.f32.mrf.mxu0
      %v513 = vadd.f32 0.0, %v512
      %v514 = vpop.f32.mrf.mxu0
      %v515 = vpop.f32.mrf.mxu0
      %v516 = vadd.f32 0.0, %v515
      %v517 = vpop.f32.mrf.mxu0
      %518 = vmatprep.mubr.bf16.mxu0 0
      %519 = vmatmul.mubr.bf16.gmra.mxu0 %v378
      %v520 = vpop.f32.mrf.mxu0
      %v521 = vadd.f32 0.0, %v520
      %v522 = vpop.f32.mrf.mxu0
      %v523 = vpop.f32.mrf.mxu0
      %v524 = vadd.f32 0.0, %v523
      %v525 = vpop.f32.mrf.mxu0
      %526 = vmatprep.mubr.bf16.mxu0 0
      %527 = vmatmul.mubr.bf16.gmra.mxu0 %v379
      %v528 = vpop.f32.mrf.mxu0
      %v529 = vadd.f32 0.0, %v528
      %v530 = vpop.f32.mrf.mxu0
      %v531 = vpop.f32.mrf.mxu0
      %v532 = vadd.f32 0.0, %v531
      %v533 = vpop.f32.mrf.mxu0
      %534 = vmatprep.mubr.bf16.mxu0 0
      %535 = vmatmul.mubr.bf16.gmra.mxu0 %v380
      %v536 = vpop.f32.mrf.mxu0
      %v537 = vadd.f32 0.0, %v536
      %v538 = vpop.f32.mrf.mxu0
      %v539 = vpop.f32.mrf.mxu0
      %v540 = vadd.f32 0.0, %v539
      %v541 = vpop.f32.mrf.mxu0
      %542 = vmatprep.mubr.bf16.mxu0 0
      %543 = vmatmul.mubr.bf16.gmra.mxu0 %v381
      %v544 = vpop.f32.mrf.mxu0
      %v545 = vadd.f32 0.0, %v544
      %v546 = vpop.f32.mrf.mxu0
      %v547 = vpop.f32.mrf.mxu0
      %v548 = vadd.f32 0.0, %v547
      %v549 = vpop.f32.mrf.mxu0
      %550 = vmatprep.mubr.bf16.mxu0 0
      %551 = vmatmul.mubr.bf16.gmra.mxu0 %v382
      %v552 = vpop.f32.mrf.mxu0
      %v553 = vadd.f32 0.0, %v552
      %v554 = vpop.f32.mrf.mxu0
      %v555 = vpop.f32.mrf.mxu0
      %v556 = vadd.f32 0.0, %v555
      %v557 = vpop.f32.mrf.mxu0
      %558 = vmatprep.mubr.bf16.mxu0 0
      %559 = vmatmul.mubr.bf16.gmra.mxu0 %v383
      %v560 = vpop.f32.mrf.mxu0
      %v561 = vadd.f32 0.0, %v560
      %v562 = vpop.f32.mrf.mxu0
      %v563 = vpop.f32.mrf.mxu0
      %v564 = vadd.f32 0.0, %v563
      %v565 = vpop.f32.mrf.mxu0
      %566 = vmatprep.mubr.bf16.mxu0 0
      %567 = vmatmul.mubr.bf16.gmra.mxu0 %v384
      %v568 = vpop.f32.mrf.mxu0
      %v569 = vadd.f32 0.0, %v568
      %v570 = vpop.f32.mrf.mxu0
      %v571 = vpop.f32.mrf.mxu0
      %v572 = vadd.f32 0.0, %v571
      %v573 = vpop.f32.mrf.mxu0
      %574 = vmatprep.mubr.bf16.mxu0 0
      %575 = vmatmul.mubr.bf16.gmra.mxu0 %v385
      %v576 = vpop.f32.mrf.mxu0
      %v577 = vadd.f32 0.0, %v576
      %v578 = vpop.f32.mrf.mxu0
      %v579 = vpop.f32.mrf.mxu0
      %v580 = vadd.f32 0.0, %v579
      %v581 = vpop.f32.mrf.mxu0
      %582 = vmatprep.mubr.bf16.mxu0 0
      %583 = vmatmul.mubr.bf16.gmra.mxu0 %v386
      %v584 = vpop.f32.mrf.mxu0
      %v585 = vadd.f32 0.0, %v584
      %v586 = vpop.f32.mrf.mxu0
      %v587 = vpop.f32.mrf.mxu0
      %v588 = vadd.f32 0.0, %v587
      %v589 = vpop.f32.mrf.mxu0
      %590 = vmatprep.mubr.bf16.mxu0 0
      %591 = vmatmul.mubr.bf16.gmra.mxu0 %v387
      %v592 = vpop.f32.mrf.mxu0
      %v593 = vadd.f32 0.0, %v592
      %v594 = vpop.f32.mrf.mxu0
      %v595 = vpop.f32.mrf.mxu0
      %v596 = vadd.f32 0.0, %v595
      %v597 = vpop.f32.mrf.mxu0
      %598 = vmatprep.mubr.bf16.mxu0 0
      %599 = vmatmul.mubr.bf16.gmra.mxu0 %v388
      %v600 = vpop.f32.mrf.mxu0
      %v601 = vadd.f32 0.0, %v600
      %v602 = vpop.f32.mrf.mxu0
      %v603 = vpop.f32.mrf.mxu0
      %v604 = vadd.f32 0.0, %v603
      %v605 = vpop.f32.mrf.mxu0
      %606 = vmatprep.mubr.bf16.mxu0 0
      %607 = vmatmul.mubr.bf16.gmra.mxu0 %v389
      %v608 = vpop.f32.mrf.mxu0
      %v609 = vadd.f32 0.0, %v608
      %v610 = vpop.f32.mrf.mxu0
      %v611 = vpop.f32.mrf.mxu0
      %v612 = vadd.f32 0.0, %v611
      %v613 = vpop.f32.mrf.mxu0
      %614 = vdwg.mxu0
      %615 = vst [vmem:[#allocation2] sm:$0xff] %v489
      %616 = vst [vmem:[#allocation2 + $0x8] sm:$0xff] %v492
      %617 = vst [vmem:[#allocation2 + $0x10] sm:$0xff] %v497
      %618 = vst [vmem:[#allocation2 + $0x18] sm:$0xff] %v500
      %619 = vst [vmem:[#allocation2 + $0x20] sm:$0xff] %v505
      %620 = vst [vmem:[#allocation2 + $0x28] sm:$0xff] %v508
      %621 = vst [vmem:[#allocation2 + $0x30] sm:$0xff] %v513
      %622 = vst [vmem:[#allocation2 + $0x38] sm:$0xff] %v516
      %623 = vst [vmem:[#allocation2 + $0x40] sm:$0xff] %v521
      %624 = vst [vmem:[#allocation2 + $0x48] sm:$0xff] %v524
      %625 = vst [vmem:[#allocation2 + $0x50] sm:$0xff] %v529
      %626 = vst [vmem:[#allocation2 + $0x58] sm:$0xff] %v532
      %627 = vst [vmem:[#allocation2 + $0x60] sm:$0xff] %v537
      %628 = vst [vmem:[#allocation2 + $0x68] sm:$0xff] %v540
      %629 = vst [vmem:[#allocation2 + $0x70] sm:$0xff] %v545
      %630 = vst [vmem:[#allocation2 + $0x78] sm:$0xff] %v548
      %631 = vst [vmem:[#allocation2 + $0x80] sm:$0xff] %v553
      %632 = vst [vmem:[#allocation2 + $0x88] sm:$0xff] %v556
      %633 = vst [vmem:[#allocation2 + $0x90] sm:$0xff] %v561
      %634 = vst [vmem:[#allocation2 + $0x98] sm:$0xff] %v564
      %635 = vst [vmem:[#allocation2 + $0xa0] sm:$0xff] %v569
      %636 = vst [vmem:[#allocation2 + $0xa8] sm:$0xff] %v572
      %637 = vst [vmem:[#allocation2 + $0xb0] sm:$0xff] %v577
      %638 = vst [vmem:[#allocation2 + $0xb8] sm:$0xff] %v580
      %639 = vst [vmem:[#allocation2 + $0xc0] sm:$0xff] %v585
      %640 = vst [vmem:[#allocation2 + $0xc8] sm:$0xff] %v588
      %641 = vst [vmem:[#allocation2 + $0xd0] sm:$0xff] %v593
      %642 = vst [vmem:[#allocation2 + $0xd8] sm:$0xff] %v596
      %643 = vst [vmem:[#allocation2 + $0xe0] sm:$0xff] %v601
      %644 = vst [vmem:[#allocation2 + $0xe8] sm:$0xff] %v604
      %645 = vst [vmem:[#allocation2 + $0xf0] sm:$0xff] %v609
      %646 = vst [vmem:[#allocation2 + $0xf8] sm:$0xff] %v612
      %v647 = vld [vmem:[#allocation2] sm:$0xff]
      %v648 = vld [vmem:[#allocation2 + $0x8] sm:$0xff]
      %v649 = vld [vmem:[#allocation2 + $0x10] sm:$0xff]
      %v650 = vld [vmem:[#allocation2 + $0x18] sm:$0xff]
      %v651 = vld [vmem:[#allocation2 + $0x20] sm:$0xff]
      %v652 = vld [vmem:[#allocation2 + $0x28] sm:$0xff]
      %v653 = vld [vmem:[#allocation2 + $0x30] sm:$0xff]
      %v654 = vld [vmem:[#allocation2 + $0x38] sm:$0xff]
      %v655 = vld [vmem:[#allocation2 + $0x40] sm:$0xff]
      %v656 = vld [vmem:[#allocation2 + $0x48] sm:$0xff]
      %v657 = vld [vmem:[#allocation2 + $0x50] sm:$0xff]
      %v658 = vld [vmem:[#allocation2 + $0x58] sm:$0xff]
      %v659 = vld [vmem:[#allocation2 + $0x60] sm:$0xff]
      %v660 = vld [vmem:[#allocation2 + $0x68] sm:$0xff]
      %v661 = vld [vmem:[#allocation2 + $0x70] sm:$0xff]
      %v662 = vld [vmem:[#allocation2 + $0x78] sm:$0xff]
      %v663 = vld [vmem:[#allocation2 + $0x80] sm:$0xff]
      %v664 = vld [vmem:[#allocation2 + $0x88] sm:$0xff]
      %v665 = vld [vmem:[#allocation2 + $0x90] sm:$0xff]
      %v666 = vld [vmem:[#allocation2 + $0x98] sm:$0xff]
      %v667 = vld [vmem:[#allocation2 + $0xa0] sm:$0xff]
      %v668 = vld [vmem:[#allocation2 + $0xa8] sm:$0xff]
      %v669 = vld [vmem:[#allocation2 + $0xb0] sm:$0xff]
      %v670 = vld [vmem:[#allocation2 + $0xb8] sm:$0xff]
      %v671 = vld [vmem:[#allocation2 + $0xc0] sm:$0xff]
      %v672 = vld [vmem:[#allocation2 + $0xc8] sm:$0xff]
      %v673 = vld [vmem:[#allocation2 + $0xd0] sm:$0xff]
      %v674 = vld [vmem:[#allocation2 + $0xd8] sm:$0xff]
      %v675 = vld [vmem:[#allocation2 + $0xe0] sm:$0xff]
      %v676 = vld [vmem:[#allocation2 + $0xe8] sm:$0xff]
      %v677 = vld [vmem:[#allocation2 + $0xf0] sm:$0xff]
      %v678 = vld [vmem:[#allocation2 + $0xf8] sm:$0xff]
      %v679 = vld [vmem:[%s246] sm:$0x1]
      %v681 = vlaneseq
      %v682 = vshrl.u32 %v681, 7
      %v683 = vsub.s32 0, %v682
      %v684 = vrot.slane %v679, %v683
      %v686 = vadd.f32 %v647, %v684
      %v687 = vadd.f32 %v648, %v684
      %v688 = vadd.f32 %v649, %v684
      %v689 = vadd.f32 %v650, %v684
      %v690 = vadd.f32 %v651, %v684
      %v691 = vadd.f32 %v652, %v684
      %v692 = vadd.f32 %v653, %v684
      %v693 = vadd.f32 %v654, %v684
      %v694 = vadd.f32 %v655, %v684
      %v695 = vadd.f32 %v656, %v684
      %v696 = vadd.f32 %v657, %v684
      %v697 = vadd.f32 %v658, %v684
      %v698 = vadd.f32 %v659, %v684
      %v699 = vadd.f32 %v660, %v684
      %v700 = vadd.f32 %v661, %v684
      %v701 = vadd.f32 %v662, %v684
      %v702 = vadd.f32 %v663, %v684
      %v703 = vadd.f32 %v664, %v684
      %v704 = vadd.f32 %v665, %v684
      %v705 = vadd.f32 %v666, %v684
      %v706 = vadd.f32 %v667, %v684
      %v707 = vadd.f32 %v668, %v684
      %v708 = vadd.f32 %v669, %v684
      %v709 = vadd.f32 %v670, %v684
      %v710 = vadd.f32 %v671, %v684
      %v711 = vadd.f32 %v672, %v684
      %v712 = vadd.f32 %v673, %v684
      %v713 = vadd.f32 %v674, %v684
      %v714 = vadd.f32 %v675, %v684
      %v715 = vadd.f32 %v676, %v684
      %v716 = vadd.f32 %v677, %v684
      %v717 = vadd.f32 %v678, %v684
      %v718 = vmax.f32 %v686, 0.0
      %v719 = vmax.f32 %v687, 0.0
      %v720 = vmax.f32 %v688, 0.0
      %v721 = vmax.f32 %v689, 0.0
      %v722 = vmax.f32 %v690, 0.0
      %v723 = vmax.f32 %v691, 0.0
      %v724 = vmax.f32 %v692, 0.0
      %v725 = vmax.f32 %v693, 0.0
      %v726 = vmax.f32 %v694, 0.0
      %v727 = vmax.f32 %v695, 0.0
      %v728 = vmax.f32 %v696, 0.0
      %v729 = vmax.f32 %v697, 0.0
      %v730 = vmax.f32 %v698, 0.0
      %v731 = vmax.f32 %v699, 0.0
      %v732 = vmax.f32 %v700, 0.0
      %v733 = vmax.f32 %v701, 0.0
      %v734 = vmax.f32 %v702, 0.0
      %v735 = vmax.f32 %v703, 0.0
      %v736 = vmax.f32 %v704, 0.0
      %v737 = vmax.f32 %v705, 0.0
      %v738 = vmax.f32 %v706, 0.0
      %v739 = vmax.f32 %v707, 0.0
      %v740 = vmax.f32 %v708, 0.0
      %v741 = vmax.f32 %v709, 0.0
      %v742 = vmax.f32 %v710, 0.0
      %v743 = vmax.f32 %v711, 0.0
      %v744 = vmax.f32 %v712, 0.0
      %v745 = vmax.f32 %v713, 0.0
      %v746 = vmax.f32 %v714, 0.0
      %v747 = vmax.f32 %v715, 0.0
      %v748 = vmax.f32 %v716, 0.0
      %v749 = vmax.f32 %v717, 0.0
      %v750 = vpack.c.bf16 %v719, %v718
      %v751 = vpack.c.bf16 %v721, %v720
      %v752 = vpack.c.bf16 %v723, %v722
      %v753 = vpack.c.bf16 %v725, %v724
      %v754 = vpack.c.bf16 %v727, %v726
      %v755 = vpack.c.bf16 %v729, %v728
      %v756 = vpack.c.bf16 %v731, %v730
      %v757 = vpack.c.bf16 %v733, %v732
      %v758 = vpack.c.bf16 %v735, %v734
      %v759 = vpack.c.bf16 %v737, %v736
      %v760 = vpack.c.bf16 %v739, %v738
      %v761 = vpack.c.bf16 %v741, %v740
      %v762 = vpack.c.bf16 %v743, %v742
      %v763 = vpack.c.bf16 %v745, %v744
      %v764 = vpack.c.bf16 %v747, %v746
      %v765 = vpack.c.bf16 %v749, %v748
      %v782 = vunpack.c.l.b16 %v750
      %v783 = vunpack.c.h.b16 %v750
      %v784 = vunpack.c.l.b16 %v751
      %v785 = vunpack.c.h.b16 %v751
      %v786 = vunpack.c.l.b16 %v752
      %v787 = vunpack.c.h.b16 %v752
      %v788 = vunpack.c.l.b16 %v753
      %v789 = vunpack.c.h.b16 %v753
      %v790 = vunpack.c.l.b16 %v754
      %v791 = vunpack.c.h.b16 %v754
      %v792 = vunpack.c.l.b16 %v755
      %v793 = vunpack.c.h.b16 %v755
      %v794 = vunpack.c.l.b16 %v756
      %v795 = vunpack.c.h.b16 %v756
      %v796 = vunpack.c.l.b16 %v757
      %v797 = vunpack.c.h.b16 %v757
      %v798 = vunpack.c.l.b16 %v758
      %v799 = vunpack.c.h.b16 %v758
      %v800 = vunpack.c.l.b16 %v759
      %v801 = vunpack.c.h.b16 %v759
      %v802 = vunpack.c.l.b16 %v760
      %v803 = vunpack.c.h.b16 %v760
      %v804 = vunpack.c.l.b16 %v761
      %v805 = vunpack.c.h.b16 %v761
      %v806 = vunpack.c.l.b16 %v762
      %v807 = vunpack.c.h.b16 %v762
      %v808 = vunpack.c.l.b16 %v763
      %v809 = vunpack.c.h.b16 %v763
      %v810 = vunpack.c.l.b16 %v764
      %v811 = vunpack.c.h.b16 %v764
      %v812 = vunpack.c.l.b16 %v765
      %v813 = vunpack.c.h.b16 %v765
      %v814 = vpack.c.b16 %v782, %v782
      %v815 = vpack.c.b16 %v783, %v783
      %v816 = vpack.c.b16 %v784, %v784
      %v817 = vpack.c.b16 %v785, %v785
      %v818 = vpack.c.b16 %v786, %v786
      %v819 = vpack.c.b16 %v787, %v787
      %v820 = vpack.c.b16 %v788, %v788
      %v821 = vpack.c.b16 %v789, %v789
      %v822 = vpack.c.b16 %v790, %v790
      %v823 = vpack.c.b16 %v791, %v791
      %v824 = vpack.c.b16 %v792, %v792
      %v825 = vpack.c.b16 %v793, %v793
      %v826 = vpack.c.b16 %v794, %v794
      %v827 = vpack.c.b16 %v795, %v795
      %v828 = vpack.c.b16 %v796, %v796
      %v829 = vpack.c.b16 %v797, %v797
      %v830 = vpack.c.b16 %v798, %v798
      %v831 = vpack.c.b16 %v799, %v799
      %v832 = vpack.c.b16 %v800, %v800
      %v833 = vpack.c.b16 %v801, %v801
      %v834 = vpack.c.b16 %v802, %v802
      %v835 = vpack.c.b16 %v803, %v803
      %v836 = vpack.c.b16 %v804, %v804
      %v837 = vpack.c.b16 %v805, %v805
      %v838 = vpack.c.b16 %v806, %v806
      %v839 = vpack.c.b16 %v807, %v807
      %v840 = vpack.c.b16 %v808, %v808
      %v841 = vpack.c.b16 %v809, %v809
      %v842 = vpack.c.b16 %v810, %v810
      %v843 = vpack.c.b16 %v811, %v811
      %v844 = vpack.c.b16 %v812, %v812
      %v845 = vpack.c.b16 %v813, %v813
      %878 = vst [vmem:[%s259] sm:$0xf] %v814
      %879 = vst [vmem:[%s259 + $0x4] sm:$0xf] %v815
      %880 = vst [vmem:[%s259 + $0x8] sm:$0xf] %v816
      %881 = vst [vmem:[%s259 + $0xc] sm:$0xf] %v817
      %882 = vst [vmem:[%s259 + $0x10] sm:$0xf] %v818
      %883 = vst [vmem:[%s259 + $0x14] sm:$0xf] %v819
      %884 = vst [vmem:[%s259 + $0x18] sm:$0xf] %v820
      %885 = vst [vmem:[%s259 + $0x1c] sm:$0xf] %v821
      %886 = vst [vmem:[%s259 + $0x20] sm:$0xf] %v822
      %887 = vst [vmem:[%s259 + $0x24] sm:$0xf] %v823
      %888 = vst [vmem:[%s259 + $0x28] sm:$0xf] %v824
      %889 = vst [vmem:[%s259 + $0x2c] sm:$0xf] %v825
      %890 = vst [vmem:[%s259 + $0x30] sm:$0xf] %v826
      %891 = vst [vmem:[%s259 + $0x34] sm:$0xf] %v827
      %892 = vst [vmem:[%s259 + $0x38] sm:$0xf] %v828
      %893 = vst [vmem:[%s259 + $0x3c] sm:$0xf] %v829
      %894 = vst [vmem:[%s259 + $0x40] sm:$0xf] %v830
      %895 = vst [vmem:[%s259 + $0x44] sm:$0xf] %v831
      %896 = vst [vmem:[%s259 + $0x48] sm:$0xf] %v832
      %897 = vst [vmem:[%s259 + $0x4c] sm:$0xf] %v833
      %898 = vst [vmem:[%s259 + $0x50] sm:$0xf] %v834
      %899 = vst [vmem:[%s259 + $0x54] sm:$0xf] %v835
      %900 = vst [vmem:[%s259 + $0x58] sm:$0xf] %v836
      %901 = vst [vmem:[%s259 + $0x5c] sm:$0xf] %v837
      %902 = vst [vmem:[%s259 + $0x60] sm:$0xf] %v838
      %903 = vst [vmem:[%s259 + $0x64] sm:$0xf] %v839
      %904 = vst [vmem:[%s259 + $0x68] sm:$0xf] %v840
      %905 = vst [vmem:[%s259 + $0x6c] sm:$0xf] %v841
      %906 = vst [vmem:[%s259 + $0x70] sm:$0xf] %v842
      %907 = vst [vmem:[%s259 + $0x74] sm:$0xf] %v843
      %908 = vst [vmem:[%s259 + $0x78] sm:$0xf] %v844
      %909 = vst [vmem:[%s259 + $0x7c] sm:$0xf] %v845
      %s910 = smul.u32 16, %s21
      %p911 = scmp.lt.s32.totalorder %s19, 1
      %s912 = scalar_select %p911, %s19, 1
      %p913 = scmp.lt.s32.totalorder %s910, 15
      %s914 = scalar_select %p913, %s910, 15
      %p915 = scmp.lt.s32.totalorder %s20, 0
      %s916 = scalar_select %p915, %s20, 0
      %s917 = smul.addr %s914, 2
      %s918 = sadd.s32 %s916, %s917
      %s919 = smul.addr %s912, 32
      %s920 = sadd.s32 %s918, %s919
      %s921 = smul.addr %s920, 4
      %s922 = scalar_lea.vmem %s3, %s921
      // Predicated region
      $region33: #{conv_block_forward.2} parent=31 // pred_check
        %p923 = pneg %p135
      $region34: #{conv_block_forward.2} parent=31 // pred_check_branch
        %925 = sbr.rel (%p923) target = $region36
      $region35: #{conv_block_forward.2} parent=31 // pred_region
        %s926 = smul.u32 16, %s21
      $region36: #{conv_block_forward.2} parent=31 // pred_fallthru
        _
    $region32: #{conv_block_forward.2} parent=5 // pred_fallthru
      _
    %p927 = scmp.le.s32.totalorder 2, %s9
    // Predicated region
    $region37: #{conv_block_forward.2} parent=5 // pred_check
      %p928 = pneg %p927
    $region38: #{conv_block_forward.2} parent=5 // pred_check_branch
      %930 = sbr.rel (%p928) target = $region40
    $region39: #{conv_block_forward.2} parent=5 // pred_region
      %s931 = ssub.s32 %s9, 2
      // Predicated region
      $region41: #{conv_block_forward.2} parent=39 // pred_check
        %p932 = pneg %p141
      $region42: #{conv_block_forward.2} parent=39 // pred_check_branch
        %934 = sbr.rel (%p932) target = $region44
      $region43: #{conv_block_forward.2} parent=39 // pred_region
        %s935 = smul.u32 16, %s24
        %p936 = scmp.lt.s32.totalorder %s22, 1
        %s937 = scalar_select %p936, %s22, 1
        %p938 = scmp.lt.s32.totalorder %s935, 15
        %s939 = scalar_select %p938, %s935, 15
        %p940 = scmp.lt.s32.totalorder %s23, 0
        %s941 = scalar_select %p940, %s23, 0
        %s942 = smul.addr %s939, 2
        %s943 = sadd.s32 %s941, %s942
        %s944 = smul.addr %s937, 32
        %s945 = sadd.s32 %s943, %s944
        %s946 = smul.addr %s945, 4
        %s947 = scalar_lea.vmem %s3, %s946
      $region44: #{conv_block_forward.2} parent=39 // pred_fallthru
        _
    $region40: #{conv_block_forward.2} parent=5 // pred_fallthru
      _
  $region6: #{conv_block_forward.2} parent=0 // loop_footer
    %s13 = sadd.s32 1, %s9
  $region7: #{conv_block_forward.2} parent=0 // loop_footer_branch
    %8 = sbr.rel target = $region3
  $region8: #{conv_block_forward.2} parent=0 // loop_exit
    _

// kernel: conv_block_forward.3
$region0: #{conv_block_forward.3}
  #allocation0 [shape = 'u32[]', space=smem, size = 0x4, offset = 0x4, fixed_abs, tag = 'smem constant byte address 0x4 - core index']
  #allocation1 [shape = 'u32[144,128]{1,0:T(1,128)}', space=vmem, size = 0x12000, scoped, tag = 'internal scratch']
  #allocation2 [shape = 'f32[256,128]{1,0:T(8,128)}', space=vmem, size = 0x20000, scoped, tag = 'scratch operand']
  %s0 = inlined_call_operand.vmem [shape: bf16[2,1,16,16,128], index: 0, kind: input, shape index: {}]
  %s1 = inlined_call_operand.vmem [shape: bf16[1,1,128,128], index: 1, kind: input, shape index: {}]
  %s2 = inlined_call_operand.vmem [shape: f32[1,128], index: 2, kind: input, shape index: {}]
  %s3 = inlined_call_operand.vmem [shape: bf16[2,16,16,128], index: 3, kind: input, shape index: {}]
  %s4 = inlined_call_operand.vmem [shape: bf16[128,128], index: 4, kind: input, shape index: {}]
  %s5 = inlined_call_operand.vmem [shape: f32[1,128], index: 5, kind: input, shape index: {}]
  %s6 = inlined_call_operand.vmem [shape: f32[2,16,16,128], index: 6, kind: output, shape index: {}]
  %s7 = sld [smem:[#allocation0]]
  $region57: #{conv_block_forward.3} parent=0
    _
  %s9 = ssub.s32 1, %s7
  %s10 = scalar_select 0, %s9, %s7
  loop: start=0, step=1, limit=4
  $region2: #{conv_block_forward.3} parent=0 // loop_pre_header
    _
  $region3: #{conv_block_forward.3} parent=0 // loop_header
    %s12 = sphi 0, %s16
    %p13 = scmp.ge.s32.totalorder %s12, 4
    %s19 = sphi 0, %s38
    %s20 = sphi 0, %s34
    %s21 = sphi 0, %s30
    %s22 = sphi 0, %s19
    %s23 = sphi 0, %s20
    %s24 = sphi 0, %s21
    %s25 = sphi 0, %s22
    %s26 = sphi 0, %s23
    %s27 = sphi 0, %s24
    %s43 = sphi 0, %s45
    %s46 = sphi 0, %s43
    %s47 = sphi 0, %s46
    %s63 = sphi 0, %s47
    %s69 = sphi 0, %s71
    %s72 = sphi 0, %s69
    %s73 = sphi 0, %s72
    %s89 = sphi 0, %s73
    %s95 = sphi 0, %s97
    %s98 = sphi 0, %s95
    %s99 = sphi 0, %s98
    %s115 = sphi 0, %s99
    %s123 = sphi 0, %s125
    %s126 = sphi 0, %s123
    %s127 = sphi 0, %s126
    %s143 = sphi 0, %s127
    %s149 = sphi 0, %s151
    %s152 = sphi 0, %s149
    %s153 = sphi 0, %s152
    %s169 = sphi 0, %s153
    %s175 = sphi 0, %s177
    %s178 = sphi 0, %s175
    %s179 = sphi 0, %s178
    %s195 = sphi 0, %s179
    %s205 = sphi 0, %s207
    %s208 = sphi 0, %s205
    %s209 = sphi 0, %s208
    %s225 = sphi 0, %s209
  $region4: #{conv_block_forward.3} parent=0 // loop_header_branch
    %15 = sbr.rel (%p13) target = $region8
  $region5: #{conv_block_forward.3} parent=0 // loop_body
    %s17 = ssub.s32 %s12, 1
    %s18 = ssub.s32 %s12, 2
    %s28 = sadd.s32 1, %s21
    %p29 = scmp.ge.s32.totalorder %s28, 1
    %s30 = scalar_select %p29, 0, %s28
    %s31 = sadd.s32 1, %s20
    %s32 = scalar_select %p29, %s31, %s20
    %p33 = scmp.ge.s32.totalorder %s32, 1
    %s34 = scalar_select %p33, 0, %s32
    %s35 = sadd.s32 1, %s19
    %s36 = scalar_select %p33, %s35, %s19
    %p37 = scmp.ge.s32.totalorder %s36, 2
    %s38 = scalar_select %p37, 0, %s36
    %s39 = ssub.s32 %s19, %s38
    %s40 = ssub.s32 %s21, %s30
    %s41 = sor.u32 %s39, %s40
    %p42 = scmp.eq.s32.totalorder %s41, 0
    %s44 = sadd.s32 %s43, 1
    %s45 = scalar_select %p42, %s43, %s44
    %p48 = pneg %p42
    %p49 = scmp.eq.s32.totalorder %s12, 1
    %p50 = por %p48, %p49
    %p51 = scmp.ne.s32.totalorder %s43, %s46
    %p52 = scmp.eq.s32.totalorder %s12, 0
    %p53 = por %p51, %p52
    %p54 = scmp.ne.s32.totalorder %s43, %s46
    %p55 = scmp.eq.s32.totalorder %s17, 1
    %p56 = por %p54, %p55
    %p57 = scmp.ne.s32.totalorder %s46, %s47
    %p58 = scmp.eq.s32.totalorder %s17, 0
    %p59 = por %p57, %p58
    %p60 = scmp.ne.s32.totalorder %s46, %s47
    %p61 = scmp.eq.s32.totalorder %s18, 1
    %p62 = por %p60, %p61
    %p64 = scmp.ne.s32.totalorder %s47, %s63
    %p65 = scmp.eq.s32.totalorder %s18, 0
    %p66 = por %p64, %p65
    %s67 = ssub.s32 %s20, %s34
    %p68 = scmp.eq.s32.totalorder %s67, 0
    %s70 = sadd.s32 %s69, 1
    %s71 = scalar_select %p68, %s69, %s70
    %p74 = pneg %p68
    %p75 = scmp.eq.s32.totalorder %s12, 1
    %p76 = por %p74, %p75
    %p77 = scmp.ne.s32.totalorder %s69, %s72
    %p78 = scmp.eq.s32.totalorder %s12, 0
    %p79 = por %p77, %p78
    %p80 = scmp.ne.s32.totalorder %s69, %s72
    %p81 = scmp.eq.s32.totalorder %s17, 1
    %p82 = por %p80, %p81
    %p83 = scmp.ne.s32.totalorder %s72, %s73
    %p84 = scmp.eq.s32.totalorder %s17, 0
    %p85 = por %p83, %p84
    %p86 = scmp.ne.s32.totalorder %s72, %s73
    %p87 = scmp.eq.s32.totalorder %s18, 1
    %p88 = por %p86, %p87
    %p90 = scmp.ne.s32.totalorder %s73, %s89
    %p91 = scmp.eq.s32.totalorder %s18, 0
    %p92 = por %p90, %p91
    %s93 = ssub.s32 %s20, %s34
    %p94 = scmp.eq.s32.totalorder %s93, 0
    %s96 = sadd.s32 %s95, 1
    %s97 = scalar_select %p94, %s95, %s96
    %p100 = pneg %p94
    %p101 = scmp.eq.s32.totalorder %s12, 1
    %p102 = por %p100, %p101
    %p103 = scmp.ne.s32.totalorder %s95, %s98
    %p104 = scmp.eq.s32.totalorder %s12, 0
    %p105 = por %p103, %p104
    %p106 = scmp.ne.s32.totalorder %s95, %s98
    %p107 = scmp.eq.s32.totalorder %s17, 1
    %p108 = por %p106, %p107
    %p109 = scmp.ne.s32.totalorder %s98, %s99
    %p110 = scmp.eq.s32.totalorder %s17, 0
    %p111 = por %p109, %p110
    %p112 = scmp.ne.s32.totalorder %s98, %s99
    %p113 = scmp.eq.s32.totalorder %s18, 1
    %p114 = por %p112, %p113
    %p116 = scmp.ne.s32.totalorder %s99, %s115
    %p117 = scmp.eq.s32.totalorder %s18, 0
    %p118 = por %p116, %p117
    %s119 = ssub.s32 %s19, %s38
    %s120 = ssub.s32 %s21, %s30
    %s121 = sor.u32 %s119, %s120
    %p122 = scmp.eq.s32.totalorder %s121, 0
    %s124 = sadd.s32 %s123, 1
    %s125 = scalar_select %p122, %s123, %s124
    %p128 = pneg %p122
    %p129 = scmp.eq.s32.totalorder %s12, 1
    %p130 = por %p128, %p129
    %p131 = scmp.ne.s32.totalorder %s123, %s126
    %p132 = scmp.eq.s32.totalorder %s12, 0
    %p133 = por %p131, %p132
    %p134 = scmp.ne.s32.totalorder %s123, %s126
    %p135 = scmp.eq.s32.totalorder %s17, 1
    %p136 = por %p134, %p135
    %p137 = scmp.ne.s32.totalorder %s126, %s127
    %p138 = scmp.eq.s32.totalorder %s17, 0
    %p139 = por %p137, %p138
    %p140 = scmp.ne.s32.totalorder %s126, %s127
    %p141 = scmp.eq.s32.totalorder %s18, 1
    %p142 = por %p140, %p141
    %p144 = scmp.ne.s32.totalorder %s127, %s143
    %p145 = scmp.eq.s32.totalorder %s18, 0
    %p146 = por %p144, %p145
    %s147 = ssub.s32 %s20, %s34
    %p148 = scmp.eq.s32.totalorder %s147, 0
    %s150 = sadd.s32 %s149, 1
    %s151 = scalar_select %p148, %s149, %s150
    %p154 = pneg %p148
    %p155 = scmp.eq.s32.totalorder %s12, 1
    %p156 = por %p154, %p155
    %p157 = scmp.ne.s32.totalorder %s149, %s152
    %p158 = scmp.eq.s32.totalorder %s12, 0
    %p159 = por %p157, %p158
    %p160 = scmp.ne.s32.totalorder %s149, %s152
    %p161 = scmp.eq.s32.totalorder %s17, 1
    %p162 = por %p160, %p161
    %p163 = scmp.ne.s32.totalorder %s152, %s153
    %p164 = scmp.eq.s32.totalorder %s17, 0
    %p165 = por %p163, %p164
    %p166 = scmp.ne.s32.totalorder %s152, %s153
    %p167 = scmp.eq.s32.totalorder %s18, 1
    %p168 = por %p166, %p167
    %p170 = scmp.ne.s32.totalorder %s153, %s169
    %p171 = scmp.eq.s32.totalorder %s18, 0
    %p172 = por %p170, %p171
    %s173 = ssub.s32 %s20, %s34
    %p174 = scmp.eq.s32.totalorder %s173, 0
    %s176 = sadd.s32 %s175, 1
    %s177 = scalar_select %p174, %s175, %s176
    %p180 = pneg %p174
    %p181 = scmp.eq.s32.totalorder %s12, 1
    %p182 = por %p180, %p181
    %p183 = scmp.ne.s32.totalorder %s175, %s178
    %p184 = scmp.eq.s32.totalorder %s12, 0
    %p185 = por %p183, %p184
    %p186 = scmp.ne.s32.totalorder %s175, %s178
    %p187 = scmp.eq.s32.totalorder %s17, 1
    %p188 = por %p186, %p187
    %p189 = scmp.ne.s32.totalorder %s178, %s179
    %p190 = scmp.eq.s32.totalorder %s17, 0
    %p191 = por %p189, %p190
    %p192 = scmp.ne.s32.totalorder %s178, %s179
    %p193 = scmp.eq.s32.totalorder %s18, 1
    %p194 = por %p192, %p193
    %p196 = scmp.ne.s32.totalorder %s179, %s195
    %p197 = scmp.eq.s32.totalorder %s18, 0
    %p198 = por %p196, %p197
    %s199 = ssub.s32 %s19, %s38
    %s200 = ssub.s32 %s21, %s30
    %s201 = sor.u32 %s199, %s200
    %s202 = ssub.s32 %s20, %s34
    %s203 = sor.u32 %s201, %s202
    %p204 = scmp.eq.s32.totalorder %s203, 0
    %s206 = sadd.s32 %s205, 1
    %s207 = scalar_select %p204, %s205, %s206
    %p210 = pneg %p204
    %p211 = scmp.eq.s32.totalorder %s12, 1
    %p212 = por %p210, %p211
    %p213 = scmp.ne.s32.totalorder %s205, %s208
    %p214 = scmp.eq.s32.totalorder %s12, 0
    %p215 = por %p213, %p214
    %p216 = scmp.ne.s32.totalorder %s205, %s208
    %p217 = scmp.eq.s32.totalorder %s17, 1
    %p218 = por %p216, %p217
    %p219 = scmp.ne.s32.totalorder %s208, %s209
    %p220 = scmp.eq.s32.totalorder %s17, 0
    %p221 = por %p219, %p220
    %p222 = scmp.ne.s32.totalorder %s208, %s209
    %p223 = scmp.eq.s32.totalorder %s18, 1
    %p224 = por %p222, %p223
    %p226 = scmp.ne.s32.totalorder %s209, %s225
    %p227 = scmp.eq.s32.totalorder %s18, 0
    %p228 = por %p226, %p227
    %p229 = scmp.le.s32.totalorder 1, %s12
    %p230 = scmp.lt.s32.totalorder %s12, 3
    %p231 = pnand %p229, %p230
    %p232 = pneg %p231
    // Predicated region
    $region9: #{conv_block_forward.3} parent=5 // pred_check
      _
    $region10: #{conv_block_forward.3} parent=5 // pred_check_branch
      %234 = sbr.rel (%p231) target = $region12
    $region11: #{conv_block_forward.3} parent=5 // pred_region
      %s235 = ssub.s32 %s12, 1
      // Predicated region
      $region13: #{conv_block_forward.3} parent=11 // pred_check
        %p236 = pneg %p85
      $region14: #{conv_block_forward.3} parent=11 // pred_check_branch
        %238 = sbr.rel (%p236) target = $region16
      $region15: #{conv_block_forward.3} parent=11 // pred_region
        %p239 = scmp.lt.s32.totalorder %s23, 0
        %s240 = scalar_select %p239, %s23, 0
        %s241 = smul.addr %s240, 4
        %s242 = scalar_lea.vmem %s1, %s241
      $region16: #{conv_block_forward.3} parent=11 // pred_fallthru
        _
      // Predicated region
      $region17: #{conv_block_forward.3} parent=11 // pred_check
        %p243 = pneg %p111
      $region18: #{conv_block_forward.3} parent=11 // pred_check_branch
        %245 = sbr.rel (%p243) target = $region20
      $region19: #{conv_block_forward.3} parent=11 // pred_region
        %p246 = scmp.lt.s32.totalorder %s23, 0
        %s247 = scalar_select %p246, %s23, 0
        %s248 = scalar_lea.vmem %s2, %s247
      $region20: #{conv_block_forward.3} parent=11 // pred_fallthru
        _
      // Predicated region
      $region21: #{conv_block_forward.3} parent=11 // pred_check
        %p249 = pneg %p165
      $region22: #{conv_block_forward.3} parent=11 // pred_check_branch
        %251 = sbr.rel (%p249) target = $region24
      $region23: #{conv_block_forward.3} parent=11 // pred_region
        %p252 = scmp.lt.s32.totalorder %s23, 0
        %s253 = scalar_select %p252, %s23, 0
        %s254 = smul.addr %s253, 4
        %s255 = scalar_lea.vmem %s4, %s254
      $region24: #{conv_block_forward.3} parent=11 // pred_fallthru
        _
      // Predicated region
      $region25: #{conv_block_forward.3} parent=11 // pred_check
        %p256 = pneg %p191
      $region26: #{conv_block_forward.3} parent=11 // pred_check_branch
        %258 = sbr.rel (%p256) target = $region28
      $region27: #{conv_block_forward.3} parent=11 // pred_region
        %p259 = scmp.lt.s32.totalorder %s23, 0
        %s260 = scalar_select %p259, %s23, 0
        %s261 = scalar_lea.vmem %s5, %s260
      $region28: #{conv_block_forward.3} parent=11 // pred_fallthru
        _
    $region12: #{conv_block_forward.3} parent=5 // pred_fallthru
      _
    %p262 = scmp.lt.s32.totalorder %s12, 2
    // Predicated region
    $region29: #{conv_block_forward.3} parent=5 // pred_check
      %p263 = pneg %p262
    $region30: #{conv_block_forward.3} parent=5 // pred_check_branch
      %265 = sbr.rel (%p263) target = $region32
    $region31: #{conv_block_forward.3} parent=5 // pred_region
      // Predicated region
      $region33: #{conv_block_forward.3} parent=31 // pred_check
        %p266 = pneg %p53
      $region34: #{conv_block_forward.3} parent=31 // pred_check_branch
        %268 = sbr.rel (%p266) target = $region36
      $region35: #{conv_block_forward.3} parent=31 // pred_region
        %s269 = smul.u32 16, %s21
        %p270 = scmp.lt.s32.totalorder %s19, 1
        %s271 = scalar_select %p270, %s19, 1
        %p272 = scmp.lt.s32.totalorder %s269, 15
        %s273 = scalar_select %p272, %s269, 15
        %s274 = smul.addr %s273, 2
        %s275 = smul.addr %s271, 32
        %s276 = sadd.s32 %s274, %s275
        %s277 = smul.addr %s276, 4
        %s278 = scalar_lea.vmem %s0, %s277
        %s279 = smul.u32 16, %s21
      $region36: #{conv_block_forward.3} parent=31 // pred_fallthru
        _
      // Predicated region
      $region37: #{conv_block_forward.3} parent=31 // pred_check
        %p280 = pneg %p133
      $region38: #{conv_block_forward.3} parent=31 // pred_check_branch
        %282 = sbr.rel (%p280) target = $region40
      $region39: #{conv_block_forward.3} parent=31 // pred_region
        %s283 = smul.u32 16, %s21
        %p284 = scmp.lt.s32.totalorder %s19, 1
        %s285 = scalar_select %p284, %s19, 1
        %p286 = scmp.lt.s32.totalorder %s283, 15
        %s287 = scalar_select %p286, %s283, 15
        %s288 = smul.addr %s287, 2
        %s289 = smul.addr %s285, 32
        %s290 = sadd.s32 %s288, %s289
        %s291 = smul.addr %s290, 4
        %s292 = scalar_lea.vmem %s3, %s291
        %s293 = smul.u32 16, %s21
      $region40: #{conv_block_forward.3} parent=31 // pred_fallthru
        _
    $region32: #{conv_block_forward.3} parent=5 // pred_fallthru
      _
    %p294 = scmp.le.s32.totalorder 1, %s12
    %p295 = scmp.lt.s32.totalorder %s12, 3
    %p296 = pnand %p294, %p295
    %p297 = pneg %p296
    // Predicated region
    $region41: #{conv_block_forward.3} parent=5 // pred_check
      _
    $region42: #{conv_block_forward.3} parent=5 // pred_check_branch
      %299 = sbr.rel (%p296) target = $region44
    $region43: #{conv_block_forward.3} parent=5 // pred_region
      %s300 = ssub.s32 %s12, 1
      %s301 = smul.u32 16, %s24
      %p302 = scmp.lt.s32.totalorder %s22, 1
      %s303 = scalar_select %p302, %s22, 1
      %p304 = scmp.lt.s32.totalorder %s301, 15
      %s305 = scalar_select %p304, %s301, 15
      %s306 = smul.addr %s305, 2
      %s307 = smul.addr %s303, 32
      %s308 = sadd.s32 %s306, %s307
      %s309 = smul.addr %s308, 4
      %s310 = scalar_lea.vmem %s0, %s309
      %p311 = pneg %p59
      %p312 = pneg %p56
      %p313 = scmp.lt.s32.totalorder %s23, 0
      %s314 = scalar_select %p313, %s23, 0
      %s315 = smul.addr %s314, 4
      %s316 = scalar_lea.vmem %s1, %s315
      %p317 = pneg %p85
      %p318 = pneg %p82
      %p319 = scmp.lt.s32.totalorder %s23, 0
      %s320 = scalar_select %p319, %s23, 0
      %s321 = scalar_lea.vmem %s2, %s320
      %p322 = pneg %p111
      %p323 = pneg %p108
      %s324 = smul.u32 16, %s24
      %p325 = scmp.lt.s32.totalorder %s22, 1
      %s326 = scalar_select %p325, %s22, 1
      %p327 = scmp.lt.s32.totalorder %s324, 15
      %s328 = scalar_select %p327, %s324, 15
      %s329 = smul.addr %s328, 2
      %s330 = smul.addr %s326, 32
      %s331 = sadd.s32 %s329, %s330
      %s332 = smul.addr %s331, 4
      %s333 = scalar_lea.vmem %s3, %s332
      %p334 = pneg %p139
      %p335 = pneg %p136
      %p336 = scmp.lt.s32.totalorder %s23, 0
      %s337 = scalar_select %p336, %s23, 0
      %s338 = smul.addr %s337, 4
      %s339 = scalar_lea.vmem %s4, %s338
      %p340 = pneg %p165
      %p341 = pneg %p162
      %p342 = scmp.lt.s32.totalorder %s23, 0
      %s343 = scalar_select %p342, %s23, 0
      %s344 = scalar_lea.vmem %s5, %s343
      %p345 = pneg %p191
      %p346 = pneg %p188
      %p347 = pneg %p221
      %p348 = pneg %p218
      %s349 = smul.u32 16, %s24
      %p350 = scmp.lt.s32.totalorder %s22, 1
      %s351 = scalar_select %p350, %s22, 1
      %p352 = scmp.lt.s32.totalorder %s349, 15
      %s353 = scalar_select %p352, %s349, 15
      %p354 = scmp.lt.s32.totalorder %s23, 0
      %s355 = scalar_select %p354, %s23, 0
      %s356 = smul.addr %s353, 2
      %s357 = sadd.s32 %s355, %s356
      %s358 = smul.addr %s351, 32
      %s359 = sadd.s32 %s357, %s358
      %s360 = smul.addr %s359, 8
      %s361 = scalar_lea.vmem %s6, %s360
      %s362 = smul.u32 16, %s24
      %p363 = scmp.lt.s32.totalorder %s22, 1
      %s364 = scalar_select %p363, %s22, 1
      %p365 = scmp.lt.s32.totalorder %s362, 15
      %s366 = scalar_select %p365, %s362, 15
      %s367 = smul.addr %s366, 2
      %s368 = smul.addr %s364, 32
      %s369 = sadd.s32 %s367, %s368
      %s370 = smul.addr %s369, 4
      %s371 = scalar_lea.vmem %s0, %s370
      %s372 = smul.u32 16, %s24
      %p373 = scmp.lt.s32.totalorder %s23, 0
      %s374 = scalar_select %p373, %s23, 0
      %s375 = smul.addr %s374, 4
      %s376 = scalar_lea.vmem %s1, %s375
      %p377 = scmp.lt.s32.totalorder %s23, 0
      %s378 = scalar_select %p377, %s23, 0
      %s379 = scalar_lea.vmem %s2, %s378
      %s380 = smul.u32 16, %s24
      %p381 = scmp.lt.s32.totalorder %s22, 1
      %s382 = scalar_select %p381, %s22, 1
      %p383 = scmp.lt.s32.totalorder %s380, 15
      %s384 = scalar_select %p383, %s380, 15
      %s385 = smul.addr %s384, 2
      %s386 = smul.addr %s382, 32
      %s387 = sadd.s32 %s385, %s386
      %s388 = smul.addr %s387, 4
      %s389 = scalar_lea.vmem %s3, %s388
      %s390 = smul.u32 16, %s24
      %p391 = scmp.lt.s32.totalorder %s23, 0
      %s392 = scalar_select %p391, %s23, 0
      %s393 = smul.addr %s392, 4
      %s394 = scalar_lea.vmem %s4, %s393
      %p395 = scmp.lt.s32.totalorder %s23, 0
      %s396 = scalar_select %p395, %s23, 0
      %s397 = scalar_lea.vmem %s5, %s396
      %s398 = smul.u32 16, %s24
      %p399 = scmp.lt.s32.totalorder %s22, 1
      %s400 = scalar_select %p399, %s22, 1
      %p401 = scmp.lt.s32.totalorder %s398, 15
      %s402 = scalar_select %p401, %s398, 15
      %p403 = scmp.lt.s32.totalorder %s23, 0
      %s404 = scalar_select %p403, %s23, 0
      %s405 = smul.addr %s402, 2
      %s406 = sadd.s32 %s404, %s405
      %s407 = smul.addr %s400, 32
      %s408 = sadd.s32 %s406, %s407
      %s409 = smul.addr %s408, 8
      %s410 = scalar_lea.vmem %s6, %s409
      %s411 = smul.u32 16, %s24
      %v413 = vld [vmem:[%s371] sm:$0xf]
      %v414 = vld [vmem:[%s371 + $0x4] sm:$0xf]
      %v415 = vld [vmem:[%s371 + $0x8] sm:$0xf]
      %v416 = vld [vmem:[%s371 + $0xc] sm:$0xf]
      %v417 = vld [vmem:[%s371 + $0x10] sm:$0xf]
      %v418 = vld [vmem:[%s371 + $0x14] sm:$0xf]
      %v419 = vld [vmem:[%s371 + $0x18] sm:$0xf]
      %v420 = vld [vmem:[%s371 + $0x1c] sm:$0xf]
      %v421 = vld [vmem:[%s371 + $0x20] sm:$0xf]
      %v422 = vld [vmem:[%s371 + $0x24] sm:$0xf]
      %v423 = vld [vmem:[%s371 + $0x28] sm:$0xf]
      %v424 = vld [vmem:[%s371 + $0x2c] sm:$0xf]
      %v425 = vld [vmem:[%s371 + $0x30] sm:$0xf]
      %v426 = vld [vmem:[%s371 + $0x34] sm:$0xf]
      %v427 = vld [vmem:[%s371 + $0x38] sm:$0xf]
      %v428 = vld [vmem:[%s371 + $0x3c] sm:$0xf]
      %v429 = vld [vmem:[%s371 + $0x40] sm:$0xf]
      %v430 = vld [vmem:[%s371 + $0x44] sm:$0xf]
      %v431 = vld [vmem:[%s371 + $0x48] sm:$0xf]
      %v432 = vld [vmem:[%s371 + $0x4c] sm:$0xf]
      %v433 = vld [vmem:[%s371 + $0x50] sm:$0xf]
      %v434 = vld [vmem:[%s371 + $0x54] sm:$0xf]
      %v435 = vld [vmem:[%s371 + $0x58] sm:$0xf]
      %v436 = vld [vmem:[%s371 + $0x5c] sm:$0xf]
      %v437 = vld [vmem:[%s371 + $0x60] sm:$0xf]
      %v438 = vld [vmem:[%s371 + $0x64] sm:$0xf]
      %v439 = vld [vmem:[%s371 + $0x68] sm:$0xf]
      %v440 = vld [vmem:[%s371 + $0x6c] sm:$0xf]
      %v441 = vld [vmem:[%s371 + $0x70] sm:$0xf]
      %v442 = vld [vmem:[%s371 + $0x74] sm:$0xf]
      %v443 = vld [vmem:[%s371 + $0x78] sm:$0xf]
      %v444 = vld [vmem:[%s371 + $0x7c] sm:$0xf]
      %v445 = vld [vmem:[%s376] sm:$0xf]
      %v446 = vld [vmem:[%s376 + $0x4] sm:$0xf]
      %v447 = vld [vmem:[%s376 + $0x8] sm:$0xf]
      %v448 = vld [vmem:[%s376 + $0xc] sm:$0xf]
      %v449 = vld [vmem:[%s376 + $0x10] sm:$0xf]
      %v450 = vld [vmem:[%s376 + $0x14] sm:$0xf]
      %v451 = vld [vmem:[%s376 + $0x18] sm:$0xf]
      %v452 = vld [vmem:[%s376 + $0x1c] sm:$0xf]
      %v453 = vld [vmem:[%s376 + $0x20] sm:$0xf]
      %v454 = vld [vmem:[%s376 + $0x24] sm:$0xf]
      %v455 = vld [vmem:[%s376 + $0x28] sm:$0xf]
      %v456 = vld [vmem:[%s376 + $0x2c] sm:$0xf]
      %v457 = vld [vmem:[%s376 + $0x30] sm:$0xf]
      %v458 = vld [vmem:[%s376 + $0x34] sm:$0xf]
      %v459 = vld [vmem:[%s376 + $0x38] sm:$0xf]
      %v460 = vld [vmem:[%s376 + $0x3c] sm:$0xf]
      %v493 = vunpack.c.l.b16 %v413
      %v494 = vunpack.c.l.b16 %v414
      %v495 = vunpack.c.l.b16 %v415
      %v496 = vunpack.c.l.b16 %v416
      %v497 = vunpack.c.l.b16 %v417
      %v498 = vunpack.c.l.b16 %v418
      %v499 = vunpack.c.l.b16 %v419
      %v500 = vunpack.c.l.b16 %v420
      %v501 = vunpack.c.l.b16 %v421
      %v502 = vunpack.c.l.b16 %v422
      %v503 = vunpack.c.l.b16 %v423
      %v504 = vunpack.c.l.b16 %v424
      %v505 = vunpack.c.l.b16 %v425
      %v506 = vunpack.c.l.b16 %v426
      %v507 = vunpack.c.l.b16 %v427
      %v508 = vunpack.c.l.b16 %v428
      %v509 = vunpack.c.l.b16 %v429
      %v510 = vunpack.c.l.b16 %v430
      %v511 = vunpack.c.l.b16 %v431
      %v512 = vunpack.c.l.b16 %v432
      %v513 = vunpack.c.l.b16 %v433
      %v514 = vunpack.c.l.b16 %v434
      %v515 = vunpack.c.l.b16 %v435
      %v516 = vunpack.c.l.b16 %v436
      %v517 = vunpack.c.l.b16 %v437
      %v518 = vunpack.c.l.b16 %v438
      %v519 = vunpack.c.l.b16 %v439
      %v520 = vunpack.c.l.b16 %v440
      %v521 = vunpack.c.l.b16 %v441
      %v522 = vunpack.c.l.b16 %v442
      %v523 = vunpack.c.l.b16 %v443
      %v524 = vunpack.c.l.b16 %v444
      %v525 = vpack.c.b16 %v494, %v493
      %v526 = vpack.c.b16 %v496, %v495
      %v527 = vpack.c.b16 %v498, %v497
      %v528 = vpack.c.b16 %v500, %v499
      %v529 = vpack.c.b16 %v502, %v501
      %v530 = vpack.c.b16 %v504, %v503
      %v531 = vpack.c.b16 %v506, %v505
      %v532 = vpack.c.b16 %v508, %v507
      %v533 = vpack.c.b16 %v510, %v509
      %v534 = vpack.c.b16 %v512, %v511
      %v535 = vpack.c.b16 %v514, %v513
      %v536 = vpack.c.b16 %v516, %v515
      %v537 = vpack.c.b16 %v518, %v517
      %v538 = vpack.c.b16 %v520, %v519
      %v539 = vpack.c.b16 %v522, %v521
      %v540 = vpack.c.b16 %v524, %v523
      %v573 = vunpack.c.l.b16 %v445
      %v574 = vunpack.c.l.b16 %v446
      %v575 = vunpack.c.l.b16 %v447
      %v576 = vunpack.c.l.b16 %v448
      %v577 = vunpack.c.l.b16 %v449
      %v578 = vunpack.c.l.b16 %v450
      %v579 = vunpack.c.l.b16 %v451
      %v580 = vunpack.c.l.b16 %v452
      %v581 = vunpack.c.l.b16 %v453
      %v582 = vunpack.c.l.b16 %v454
      %v583 = vunpack.c.l.b16 %v455
      %v584 = vunpack.c.l.b16 %v456
      %v585 = vunpack.c.l.b16 %v457
      %v586 = vunpack.c.l.b16 %v458
      %v587 = vunpack.c.l.b16 %v459
      %v588 = vunpack.c.l.b16 %v460
      %v589 = vpack.c.b16 %v574, %v573
      %v590 = vpack.c.b16 %v576, %v575
      %v591 = vpack.c.b16 %v578, %v577
      %v592 = vpack.c.b16 %v580, %v579
      %v593 = vpack.c.b16 %v582, %v581
      %v594 = vpack.c.b16 %v584, %v583
      %v595 = vpack.c.b16 %v586, %v585
      %v596 = vpack.c.b16 %v588, %v587
      %605 = vmatprep.subr.bf16.mxu0 0
      %606 = vmatpush1.bf16.msra.mxu0 %v596
      %607 = vmatprep.subr.bf16.mxu0 0
      %608 = vmatpush1.bf16.msra.mxu0 %v595
      %609 = vmatprep.subr.bf16.mxu0 0
      %610 = vmatpush1.bf16.msra.mxu0 %v594
      %611 = vmatprep.subr.bf16.mxu0 0
      %612 = vmatpush1.bf16.msra.mxu0 %v593
      %613 = vmatprep.subr.bf16.mxu0 0
      %614 = vmatpush1.bf16.msra.mxu0 %v592
      %615 = vmatprep.subr.bf16.mxu0 0
      %616 = vmatpush1.bf16.msra.mxu0 %v591
      %617 = vmatprep.subr.bf16.mxu0 0
      %618 = vmatpush1.bf16.msra.mxu0 %v590
      %619 = vmatprep.subr.bf16.mxu0 0
      %620 = vmatpush1.bf16.msra.mxu0 %v589
      %621 = vmatprep.subr.bf16.mxu0 0
      %622 = vmatpush2.bf16.msra.mxu0 0
      %623 = vmatprep.subr.bf16.mxu0 0
      %624 = vmatpush2.bf16.msra.mxu0 0
      %625 = vmatprep.subr.bf16.mxu0 0
      %626 = vmatpush2.bf16.msra.mxu0 0
      %627 = vmatprep.subr.bf16.mxu0 0
      %628 = vmatpush2.bf16.msra.mxu0 0
      %629 = vmatprep.subr.bf16.mxu0 0
      %630 = vmatpush2.bf16.msra.mxu0 0
      %631 = vmatprep.subr.bf16.mxu0 0
      %632 = vmatpush2.bf16.msra.mxu0 0
      %633 = vmatprep.subr.bf16.mxu0 0
      %634 = vmatpush2.bf16.msra.mxu0 0
      %635 = vmatprep.subr.bf16.mxu0 0
      %636 = vmatpush2.bf16.msra.mxu0 0
      %637 = vmatprep.mubr.bf16.mxu0 0
      %638 = vmatmul.mubr.bf16.gmra.mxu0 %v525
      %v639 = vpop.f32.mrf.mxu0
      %v640 = vadd.f32 0.0, %v639
      %v641 = vpop.f32.mrf.mxu0
      %v642 = vpop.f32.mrf.mxu0
      %v643 = vadd.f32 0.0, %v642
      %v644 = vpop.f32.mrf.mxu0
      %645 = vmatprep.mubr.bf16.mxu0 0
      %646 = vmatmul.mubr.bf16.gmra.mxu0 %v526
      %v647 = vpop.f32.mrf.mxu0
      %v648 = vadd.f32 0.0, %v647
      %v649 = vpop.f32.mrf.mxu0
      %v650 = vpop.f32.mrf.mxu0
      %v651 = vadd.f32 0.0, %v650
      %v652 = vpop.f32.mrf.mxu0
      %653 = vmatprep.mubr.bf16.mxu0 0
      %654 = vmatmul.mubr.bf16.gmra.mxu0 %v527
      %v655 = vpop.f32.mrf.mxu0
      %v656 = vadd.f32 0.0, %v655
      %v657 = vpop.f32.mrf.mxu0
      %v658 = vpop.f32.mrf.mxu0
      %v659 = vadd.f32 0.0, %v658
      %v660 = vpop.f32.mrf.mxu0
      %661 = vmatprep.mubr.bf16.mxu0 0
      %662 = vmatmul.mubr.bf16.gmra.mxu0 %v528
      %v663 = vpop.f32.mrf.mxu0
      %v664 = vadd.f32 0.0, %v663
      %v665 = vpop.f32.mrf.mxu0
      %v666 = vpop.f32.mrf.mxu0
      %v667 = vadd.f32 0.0, %v666
      %v668 = vpop.f32.mrf.mxu0
      %669 = vmatprep.mubr.bf16.mxu0 0
      %670 = vmatmul.mubr.bf16.gmra.mxu0 %v529
      %v671 = vpop.f32.mrf.mxu0
      %v672 = vadd.f32 0.0, %v671
      %v673 = vpop.f32.mrf.mxu0
      %v674 = vpop.f32.mrf.mxu0
      %v675 = vadd.f32 0.0, %v674
      %v676 = vpop.f32.mrf.mxu0
      %677 = vmatprep.mubr.bf16.mxu0 0
      %678 = vmatmul.mubr.bf16.gmra.mxu0 %v530
      %v679 = vpop.f32.mrf.mxu0
      %v680 = vadd.f32 0.0, %v679
      %v681 = vpop.f32.mrf.mxu0
      %v682 = vpop.f32.mrf.mxu0
      %v683 = vadd.f32 0.0, %v682
      %v684 = vpop.f32.mrf.mxu0
      %685 = vmatprep.mubr.bf16.mxu0 0
      %686 = vmatmul.mubr.bf16.gmra.mxu0 %v531
      %v687 = vpop.f32.mrf.mxu0
      %v688 = vadd.f32 0.0, %v687
      %v689 = vpop.f32.mrf.mxu0
      %v690 = vpop.f32.mrf.mxu0
      %v691 = vadd.f32 0.0, %v690
      %v692 = vpop.f32.mrf.mxu0
      %693 = vmatprep.mubr.bf16.mxu0 0
      %694 = vmatmul.mubr.bf16.gmra.mxu0 %v532
      %v695 = vpop.f32.mrf.mxu0
      %v696 = vadd.f32 0.0, %v695
      %v697 = vpop.f32.mrf.mxu0
      %v698 = vpop.f32.mrf.mxu0
      %v699 = vadd.f32 0.0, %v698
      %v700 = vpop.f32.mrf.mxu0
      %701 = vmatprep.mubr.bf16.mxu0 0
      %702 = vmatmul.mubr.bf16.gmra.mxu0 %v533
      %v703 = vpop.f32.mrf.mxu0
      %v704 = vadd.f32 0.0, %v703
      %v705 = vpop.f32.mrf.mxu0
      %v706 = vpop.f32.mrf.mxu0
      %v707 = vadd.f32 0.0, %v706
      %v708 = vpop.f32.mrf.mxu0
      %709 = vmatprep.mubr.bf16.mxu0 0
      %710 = vmatmul.mubr.bf16.gmra.mxu0 %v534
      %v711 = vpop.f32.mrf.mxu0
      %v712 = vadd.f32 0.0, %v711
      %v713 = vpop.f32.mrf.mxu0
      %v714 = vpop.f32.mrf.mxu0
      %v715 = vadd.f32 0.0, %v714
      %v716 = vpop.f32.mrf.mxu0
      %717 = vmatprep.mubr.bf16.mxu0 0
      %718 = vmatmul.mubr.bf16.gmra.mxu0 %v535
      %v719 = vpop.f32.mrf.mxu0
      %v720 = vadd.f32 0.0, %v719
      %v721 = vpop.f32.mrf.mxu0
      %v722 = vpop.f32.mrf.mxu0
      %v723 = vadd.f32 0.0, %v722
      %v724 = vpop.f32.mrf.mxu0
      %725 = vmatprep.mubr.bf16.mxu0 0
      %726 = vmatmul.mubr.bf16.gmra.mxu0 %v536
      %v727 = vpop.f32.mrf.mxu0
      %v728 = vadd.f32 0.0, %v727
      %v729 = vpop.f32.mrf.mxu0
      %v730 = vpop.f32.mrf.mxu0
      %v731 = vadd.f32 0.0, %v730
      %v732 = vpop.f32.mrf.mxu0
      %733 = vmatprep.mubr.bf16.mxu0 0
      %734 = vmatmul.mubr.bf16.gmra.mxu0 %v537
      %v735 = vpop.f32.mrf.mxu0
      %v736 = vadd.f32 0.0, %v735
      %v737 = vpop.f32.mrf.mxu0
      %v738 = vpop.f32.mrf.mxu0
      %v739 = vadd.f32 0.0, %v738
      %v740 = vpop.f32.mrf.mxu0
      %741 = vmatprep.mubr.bf16.mxu0 0
      %742 = vmatmul.mubr.bf16.gmra.mxu0 %v538
      %v743 = vpop.f32.mrf.mxu0
      %v744 = vadd.f32 0.0, %v743
      %v745 = vpop.f32.mrf.mxu0
      %v746 = vpop.f32.mrf.mxu0
      %v747 = vadd.f32 0.0, %v746
      %v748 = vpop.f32.mrf.mxu0
      %749 = vmatprep.mubr.bf16.mxu0 0
      %750 = vmatmul.mubr.bf16.gmra.mxu0 %v539
      %v751 = vpop.f32.mrf.mxu0
      %v752 = vadd.f32 0.0, %v751
      %v753 = vpop.f32.mrf.mxu0
      %v754 = vpop.f32.mrf.mxu0
      %v755 = vadd.f32 0.0, %v754
      %v756 = vpop.f32.mrf.mxu0
      %757 = vmatprep.mubr.bf16.mxu0 0
      %758 = vmatmul.mubr.bf16.gmra.mxu0 %v540
      %v759 = vpop.f32.mrf.mxu0
      %v760 = vadd.f32 0.0, %v759
      %v761 = vpop.f32.mrf.mxu0
      %v762 = vpop.f32.mrf.mxu0
      %v763 = vadd.f32 0.0, %v762
      %v764 = vpop.f32.mrf.mxu0
      %765 = vdwg.mxu0
      %766 = vst [vmem:[#allocation2] sm:$0xff] %v640
      %767 = vst [vmem:[#allocation2 + $0x8] sm:$0xff] %v643
      %768 = vst [vmem:[#allocation2 + $0x10] sm:$0xff] %v648
      %769 = vst [vmem:[#allocation2 + $0x18] sm:$0xff] %v651
      %770 = vst [vmem:[#allocation2 + $0x20] sm:$0xff] %v656
      %771 = vst [vmem:[#allocation2 + $0x28] sm:$0xff] %v659
      %772 = vst [vmem:[#allocation2 + $0x30] sm:$0xff] %v664
      %773 = vst [vmem:[#allocation2 + $0x38] sm:$0xff] %v667
      %774 = vst [vmem:[#allocation2 + $0x40] sm:$0xff] %v672
      %775 = vst [vmem:[#allocation2 + $0x48] sm:$0xff] %v675
      %776 = vst [vmem:[#allocation2 + $0x50] sm:$0xff] %v680
      %777 = vst [vmem:[#allocation2 + $0x58] sm:$0xff] %v683
      %778 = vst [vmem:[#allocation2 + $0x60] sm:$0xff] %v688
      %779 = vst [vmem:[#allocation2 + $0x68] sm:$0xff] %v691
      %780 = vst [vmem:[#allocation2 + $0x70] sm:$0xff] %v696
      %781 = vst [vmem:[#allocation2 + $0x78] sm:$0xff] %v699
      %782 = vst [vmem:[#allocation2 + $0x80] sm:$0xff] %v704
      %783 = vst [vmem:[#allocation2 + $0x88] sm:$0xff] %v707
      %784 = vst [vmem:[#allocation2 + $0x90] sm:$0xff] %v712
      %785 = vst [vmem:[#allocation2 + $0x98] sm:$0xff] %v715
      %786 = vst [vmem:[#allocation2 + $0xa0] sm:$0xff] %v720
      %787 = vst [vmem:[#allocation2 + $0xa8] sm:$0xff] %v723
      %788 = vst [vmem:[#allocation2 + $0xb0] sm:$0xff] %v728
      %789 = vst [vmem:[#allocation2 + $0xb8] sm:$0xff] %v731
      %790 = vst [vmem:[#allocation2 + $0xc0] sm:$0xff] %v736
      %791 = vst [vmem:[#allocation2 + $0xc8] sm:$0xff] %v739
      %792 = vst [vmem:[#allocation2 + $0xd0] sm:$0xff] %v744
      %793 = vst [vmem:[#allocation2 + $0xd8] sm:$0xff] %v747
      %794 = vst [vmem:[#allocation2 + $0xe0] sm:$0xff] %v752
      %795 = vst [vmem:[#allocation2 + $0xe8] sm:$0xff] %v755
      %796 = vst [vmem:[#allocation2 + $0xf0] sm:$0xff] %v760
      %797 = vst [vmem:[#allocation2 + $0xf8] sm:$0xff] %v763
      %v798 = vld [vmem:[#allocation2] sm:$0xff]
      %v799 = vld [vmem:[#allocation2 + $0x8] sm:$0xff]
      %v800 = vld [vmem:[#allocation2 + $0x10] sm:$0xff]
      %v801 = vld [vmem:[#allocation2 + $0x18] sm:$0xff]
      %v802 = vld [vmem:[#allocation2 + $0x20] sm:$0xff]
      %v803 = vld [vmem:[#allocation2 + $0x28] sm:$0xff]
      %v804 = vld [vmem:[#allocation2 + $0x30] sm:$0xff]
      %v805 = vld [vmem:[#allocation2 + $0x38] sm:$0xff]
      %v806 = vld [vmem:[#allocation2 + $0x40] sm:$0xff]
      %v807 = vld [vmem:[#allocation2 + $0x48] sm:$0xff]
      %v808 = vld [vmem:[#allocation2 + $0x50] sm:$0xff]
      %v809 = vld [vmem:[#allocation2 + $0x58] sm:$0xff]
      %v810 = vld [vmem:[#allocation2 + $0x60] sm:$0xff]
      %v811 = vld [vmem:[#allocation2 + $0x68] sm:$0xff]
      %v812 = vld [vmem:[#allocation2 + $0x70] sm:$0xff]
      %v813 = vld [vmem:[#allocation2 + $0x78] sm:$0xff]
      %v814 = vld [vmem:[#allocation2 + $0x80] sm:$0xff]
      %v815 = vld [vmem:[#allocation2 + $0x88] sm:$0xff]
      %v816 = vld [vmem:[#allocation2 + $0x90] sm:$0xff]
      %v817 = vld [vmem:[#allocation2 + $0x98] sm:$0xff]
      %v818 = vld [vmem:[#allocation2 + $0xa0] sm:$0xff]
      %v819 = vld [vmem:[#allocation2 + $0xa8] sm:$0xff]
      %v820 = vld [vmem:[#allocation2 + $0xb0] sm:$0xff]
      %v821 = vld [vmem:[#allocation2 + $0xb8] sm:$0xff]
      %v822 = vld [vmem:[#allocation2 + $0xc0] sm:$0xff]
      %v823 = vld [vmem:[#allocation2 + $0xc8] sm:$0xff]
      %v824 = vld [vmem:[#allocation2 + $0xd0] sm:$0xff]
      %v825 = vld [vmem:[#allocation2 + $0xd8] sm:$0xff]
      %v826 = vld [vmem:[#allocation2 + $0xe0] sm:$0xff]
      %v827 = vld [vmem:[#allocation2 + $0xe8] sm:$0xff]
      %v828 = vld [vmem:[#allocation2 + $0xf0] sm:$0xff]
      %v829 = vld [vmem:[#allocation2 + $0xf8] sm:$0xff]
      %v830 = vld [vmem:[%s379] sm:$0x1]
      %v832 = vlaneseq
      %v833 = vshrl.u32 %v832, 7
      %v834 = vsub.s32 0, %v833
      %v835 = vrot.slane %v830, %v834
      %v837 = vadd.f32 %v798, %v835
      %v838 = vadd.f32 %v799, %v835
      %v839 = vadd.f32 %v800, %v835
      %v840 = vadd.f32 %v801, %v835
      %v841 = vadd.f32 %v802, %v835
      %v842 = vadd.f32 %v803, %v835
      %v843 = vadd.f32 %v804, %v835
      %v844 = vadd.f32 %v805, %v835
      %v845 = vadd.f32 %v806, %v835
      %v846 = vadd.f32 %v807, %v835
      %v847 = vadd.f32 %v808, %v835
      %v848 = vadd.f32 %v809, %v835
      %v849 = vadd.f32 %v810, %v835
      %v850 = vadd.f32 %v811, %v835
      %v851 = vadd.f32 %v812, %v835
      %v852 = vadd.f32 %v813, %v835
      %v853 = vadd.f32 %v814, %v835
      %v854 = vadd.f32 %v815, %v835
      %v855 = vadd.f32 %v816, %v835
      %v856 = vadd.f32 %v817, %v835
      %v857 = vadd.f32 %v818, %v835
      %v858 = vadd.f32 %v819, %v835
      %v859 = vadd.f32 %v820, %v835
      %v860 = vadd.f32 %v821, %v835
      %v861 = vadd.f32 %v822, %v835
      %v862 = vadd.f32 %v823, %v835
      %v863 = vadd.f32 %v824, %v835
      %v864 = vadd.f32 %v825, %v835
      %v865 = vadd.f32 %v826, %v835
      %v866 = vadd.f32 %v827, %v835
      %v867 = vadd.f32 %v828, %v835
      %v868 = vadd.f32 %v829, %v835
      %v869 = vld [vmem:[%s389] sm:$0xf]
      %v870 = vld [vmem:[%s389 + $0x4] sm:$0xf]
      %v871 = vld [vmem:[%s389 + $0x8] sm:$0xf]
      %v872 = vld [vmem:[%s389 + $0xc] sm:$0xf]
      %v873 = vld [vmem:[%s389 + $0x10] sm:$0xf]
      %v874 = vld [vmem:[%s389 + $0x14] sm:$0xf]
      %v875 = vld [vmem:[%s389 + $0x18] sm:$0xf]
      %v876 = vld [vmem:[%s389 + $0x1c] sm:$0xf]
      %v877 = vld [vmem:[%s389 + $0x20] sm:$0xf]
      %v878 = vld [vmem:[%s389 + $0x24] sm:$0xf]
      %v879 = vld [vmem:[%s389 + $0x28] sm:$0xf]
      %v880 = vld [vmem:[%s389 + $0x2c] sm:$0xf]
      %v881 = vld [vmem:[%s389 + $0x30] sm:$0xf]
      %v882 = vld [vmem:[%s389 + $0x34] sm:$0xf]
      %v883 = vld [vmem:[%s389 + $0x38] sm:$0xf]
      %v884 = vld [vmem:[%s389 + $0x3c] sm:$0xf]
      %v885 = vld [vmem:[%s389 + $0x40] sm:$0xf]
      %v886 = vld [vmem:[%s389 + $0x44] sm:$0xf]
      %v887 = vld [vmem:[%s389 + $0x48] sm:$0xf]
      %v888 = vld [vmem:[%s389 + $0x4c] sm:$0xf]
      %v889 = vld [vmem:[%s389 + $0x50] sm:$0xf]
      %v890 = vld [vmem:[%s389 + $0x54] sm:$0xf]
      %v891 = vld [vmem:[%s389 + $0x58] sm:$0xf]
      %v892 = vld [vmem:[%s389 + $0x5c] sm:$0xf]
      %v893 = vld [vmem:[%s389 + $0x60] sm:$0xf]
      %v894 = vld [vmem:[%s389 + $0x64] sm:$0xf]
      %v895 = vld [vmem:[%s389 + $0x68] sm:$0xf]
      %v896 = vld [vmem:[%s389 + $0x6c] sm:$0xf]
      %v897 = vld [vmem:[%s389 + $0x70] sm:$0xf]
      %v898 = vld [vmem:[%s389 + $0x74] sm:$0xf]
      %v899 = vld [vmem:[%s389 + $0x78] sm:$0xf]
      %v900 = vld [vmem:[%s389 + $0x7c] sm:$0xf]
      %v901 = vld [vmem:[%s394] sm:$0xf]
      %v902 = vld [vmem:[%s394 + $0x4] sm:$0xf]
      %v903 = vld [vmem:[%s394 + $0x8] sm:$0xf]
      %v904 = vld [vmem:[%s394 + $0xc] sm:$0xf]
      %v905 = vld [vmem:[%s394 + $0x10] sm:$0xf]
      %v906 = vld [vmem:[%s394 + $0x14] sm:$0xf]
      %v907 = vld [vmem:[%s394 + $0x18] sm:$0xf]
      %v908 = vld [vmem:[%s394 + $0x1c] sm:$0xf]
      %v909 = vld [vmem:[%s394 + $0x20] sm:$0xf]
      %v910 = vld [vmem:[%s394 + $0x24] sm:$0xf]
      %v911 = vld [vmem:[%s394 + $0x28] sm:$0xf]
      %v912 = vld [vmem:[%s394 + $0x2c] sm:$0xf]
      %v913 = vld [vmem:[%s394 + $0x30] sm:$0xf]
      %v914 = vld [vmem:[%s394 + $0x34] sm:$0xf]
      %v915 = vld [vmem:[%s394 + $0x38] sm:$0xf]
      %v916 = vld [vmem:[%s394 + $0x3c] sm:$0xf]
      %v949 = vunpack.c.l.b16 %v869
      %v950 = vunpack.c.l.b16 %v870
      %v951 = vunpack.c.l.b16 %v871
      %v952 = vunpack.c.l.b16 %v872
      %v953 = vunpack.c.l.b16 %v873
      %v954 = vunpack.c.l.b16 %v874
      %v955 = vunpack.c.l.b16 %v875
      %v956 = vunpack.c.l.b16 %v876
      %v957 = vunpack.c.l.b16 %v877
      %v958 = vunpack.c.l.b16 %v878
      %v959 = vunpack.c.l.b16 %v879
      %v960 = vunpack.c.l.b16 %v880
      %v961 = vunpack.c.l.b16 %v881
      %v962 = vunpack.c.l.b16 %v882
      %v963 = vunpack.c.l.b16 %v883
      %v964 = vunpack.c.l.b16 %v884
      %v965 = vunpack.c.l.b16 %v885
      %v966 = vunpack.c.l.b16 %v886
      %v967 = vunpack.c.l.b16 %v887
      %v968 = vunpack.c.l.b16 %v888
      %v969 = vunpack.c.l.b16 %v889
      %v970 = vunpack.c.l.b16 %v890
      %v971 = vunpack.c.l.b16 %v891
      %v972 = vunpack.c.l.b16 %v892
      %v973 = vunpack.c.l.b16 %v893
      %v974 = vunpack.c.l.b16 %v894
      %v975 = vunpack.c.l.b16 %v895
      %v976 = vunpack.c.l.b16 %v896
      %v977 = vunpack.c.l.b16 %v897
      %v978 = vunpack.c.l.b16 %v898
      %v979 = vunpack.c.l.b16 %v899
      %v980 = vunpack.c.l.b16 %v900
      %v981 = vpack.c.b16 %v950, %v949
      %v982 = vpack.c.b16 %v952, %v951
      %v983 = vpack.c.b16 %v954, %v953
      %v984 = vpack.c.b16 %v956, %v955
      %v985 = vpack.c.b16 %v958, %v957
      %v986 = vpack.c.b16 %v960, %v959
      %v987 = vpack.c.b16 %v962, %v961
      %v988 = vpack.c.b16 %v964, %v963
      %v989 = vpack.c.b16 %v966, %v965
      %v990 = vpack.c.b16 %v968, %v967
      %v991 = vpack.c.b16 %v970, %v969
      %v992 = vpack.c.b16 %v972, %v971
      %v993 = vpack.c.b16 %v974, %v973
      %v994 = vpack.c.b16 %v976, %v975
      %v995 = vpack.c.b16 %v978, %v977
      %v996 = vpack.c.b16 %v980, %v979
      %v1029 = vunpack.c.l.b16 %v901
      %v1030 = vunpack.c.l.b16 %v902
      %v1031 = vunpack.c.l.b16 %v903
      %v1032 = vunpack.c.l.b16 %v904
      %v1033 = vunpack.c.l.b16 %v905
      %v1034 = vunpack.c.l.b16 %v906
      %v1035 = vunpack.c.l.b16 %v907
      %v1036 = vunpack.c.l.b16 %v908
      %v1037 = vunpack.c.l.b16 %v909
      %v1038 = vunpack.c.l.b16 %v910
      %v1039 = vunpack.c.l.b16 %v911
      %v1040 = vunpack.c.l.b16 %v912
      %v1041 = vunpack.c.l.b16 %v913
      %v1042 = vunpack.c.l.b16 %v914
      %v1043 = vunpack.c.l.b16 %v915
      %v1044 = vunpack.c.l.b16 %v916
      %v1045 = vpack.c.b16 %v1030, %v1029
      %v1046 = vpack.c.b16 %v1032, %v1031
      %v1047 = vpack.c.b16 %v1034, %v1033
      %v1048 = vpack.c.b16 %v1036, %v1035
      %v1049 = vpack.c.b16 %v1038, %v1037
      %v1050 = vpack.c.b16 %v1040, %v1039
      %v1051 = vpack.c.b16 %v1042, %v1041
      %v1052 = vpack.c.b16 %v1044, %v1043
      %1061 = vmatprep.subr.bf16.mxu0 0
      %1062 = vmatpush1.bf16.msra.mxu0 %v1052
      %1063 = vmatprep.subr.bf16.mxu0 0
      %1064 = vmatpush1.bf16.msra.mxu0 %v1051
      %1065 = vmatprep.subr.bf16.mxu0 0
      %1066 = vmatpush1.bf16.msra.mxu0 %v1050
      %1067 = vmatprep.subr.bf16.mxu0 0
      %1068 = vmatpush1.bf16.msra.mxu0 %v1049
      %1069 = vmatprep.subr.bf16.mxu0 0
      %1070 = vmatpush1.bf16.msra.mxu0 %v1048
      %1071 = vmatprep.subr.bf16.mxu0 0
      %1072 = vmatpush1.bf16.msra.mxu0 %v1047
      %1073 = vmatprep.subr.bf16.mxu0 0
      %1074 = vmatpush1.bf16.msra.mxu0 %v1046
      %1075 = vmatprep.subr.bf16.mxu0 0
      %1076 = vmatpush1.bf16.msra.mxu0 %v1045
      %1077 = vmatprep.subr.bf16.mxu0 0
      %1078 = vmatpush2.bf16.msra.mxu0 0
      %1079 = vmatprep.subr.bf16.mxu0 0
      %1080 = vmatpush2.bf16.msra.mxu0 0
      %1081 = vmatprep.subr.bf16.mxu0 0
      %1082 = vmatpush2.bf16.msra.mxu0 0
      %1083 = vmatprep.subr.bf16.mxu0 0
      %1084 = vmatpush2.bf16.msra.mxu0 0
      %1085 = vmatprep.subr.bf16.mxu0 0
      %1086 = vmatpush2.bf16.msra.mxu0 0
      %1087 = vmatprep.subr.bf16.mxu0 0
      %1088 = vmatpush2.bf16.msra.mxu0 0
      %1089 = vmatprep.subr.bf16.mxu0 0
      %1090 = vmatpush2.bf16.msra.mxu0 0
      %1091 = vmatprep.subr.bf16.mxu0 0
      %1092 = vmatpush2.bf16.msra.mxu0 0
      %1093 = vmatprep.mubr.bf16.mxu0 0
      %1094 = vmatmul.mubr.bf16.gmra.mxu0 %v981
      %v1095 = vpop.f32.mrf.mxu0
      %v1096 = vadd.f32 0.0, %v1095
      %v1097 = vpop.f32.mrf.mxu0
      %v1098 = vpop.f32.mrf.mxu0
      %v1099 = vadd.f32 0.0, %v1098
      %v1100 = vpop.f32.mrf.mxu0
      %1101 = vmatprep.mubr.bf16.mxu0 0
      %1102 = vmatmul.mubr.bf16.gmra.mxu0 %v982
      %v1103 = vpop.f32.mrf.mxu0
      %v1104 = vadd.f32 0.0, %v1103
      %v1105 = vpop.f32.mrf.mxu0
      %v1106 = vpop.f32.mrf.mxu0
      %v1107 = vadd.f32 0.0, %v1106
      %v1108 = vpop.f32.mrf.mxu0
      %1109 = vmatprep.mubr.bf16.mxu0 0
      %1110 = vmatmul.mubr.bf16.gmra.mxu0 %v983
      %v1111 = vpop.f32.mrf.mxu0
      %v1112 = vadd.f32 0.0, %v1111
      %v1113 = vpop.f32.mrf.mxu0
      %v1114 = vpop.f32.mrf.mxu0
      %v1115 = vadd.f32 0.0, %v1114
      %v1116 = vpop.f32.mrf.mxu0
      %1117 = vmatprep.mubr.bf16.mxu0 0
      %1118 = vmatmul.mubr.bf16.gmra.mxu0 %v984
      %v1119 = vpop.f32.mrf.mxu0
      %v1120 = vadd.f32 0.0, %v1119
      %v1121 = vpop.f32.mrf.mxu0
      %v1122 = vpop.f32.mrf.mxu0
      %v1123 = vadd.f32 0.0, %v1122
      %v1124 = vpop.f32.mrf.mxu0
      %1125 = vmatprep.mubr.bf16.mxu0 0
      %1126 = vmatmul.mubr.bf16.gmra.mxu0 %v985
      %v1127 = vpop.f32.mrf.mxu0
      %v1128 = vadd.f32 0.0, %v1127
      %v1129 = vpop.f32.mrf.mxu0
      %v1130 = vpop.f32.mrf.mxu0
      %v1131 = vadd.f32 0.0, %v1130
      %v1132 = vpop.f32.mrf.mxu0
      %1133 = vmatprep.mubr.bf16.mxu0 0
      %1134 = vmatmul.mubr.bf16.gmra.mxu0 %v986
      %v1135 = vpop.f32.mrf.mxu0
      %v1136 = vadd.f32 0.0, %v1135
      %v1137 = vpop.f32.mrf.mxu0
      %v1138 = vpop.f32.mrf.mxu0
      %v1139 = vadd.f32 0.0, %v1138
      %v1140 = vpop.f32.mrf.mxu0
      %1141 = vmatprep.mubr.bf16.mxu0 0
      %1142 = vmatmul.mubr.bf16.gmra.mxu0 %v987
      %v1143 = vpop.f32.mrf.mxu0
      %v1144 = vadd.f32 0.0, %v1143
      %v1145 = vpop.f32.mrf.mxu0
      %v1146 = vpop.f32.mrf.mxu0
      %v1147 = vadd.f32 0.0, %v1146
      %v1148 = vpop.f32.mrf.mxu0
      %1149 = vmatprep.mubr.bf16.mxu0 0
      %1150 = vmatmul.mubr.bf16.gmra.mxu0 %v988
      %v1151 = vpop.f32.mrf.mxu0
      %v1152 = vadd.f32 0.0, %v1151
      %v1153 = vpop.f32.mrf.mxu0
      %v1154 = vpop.f32.mrf.mxu0
      %v1155 = vadd.f32 0.0, %v1154
      %v1156 = vpop.f32.mrf.mxu0
      %1157 = vmatprep.mubr.bf16.mxu0 0
      %1158 = vmatmul.mubr.bf16.gmra.mxu0 %v989
      %v1159 = vpop.f32.mrf.mxu0
      %v1160 = vadd.f32 0.0, %v1159
      %v1161 = vpop.f32.mrf.mxu0
      %v1162 = vpop.f32.mrf.mxu0
      %v1163 = vadd.f32 0.0, %v1162
      %v1164 = vpop.f32.mrf.mxu0
      %1165 = vmatprep.mubr.bf16.mxu0 0
      %1166 = vmatmul.mubr.bf16.gmra.mxu0 %v990
      %v1167 = vpop.f32.mrf.mxu0
      %v1168 = vadd.f32 0.0, %v1167
      %v1169 = vpop.f32.mrf.mxu0
      %v1170 = vpop.f32.mrf.mxu0
      %v1171 = vadd.f32 0.0, %v1170
      %v1172 = vpop.f32.mrf.mxu0
      %1173 = vmatprep.mubr.bf16.mxu0 0
      %1174 = vmatmul.mubr.bf16.gmra.mxu0 %v991
      %v1175 = vpop.f32.mrf.mxu0
      %v1176 = vadd.f32 0.0, %v1175
      %v1177 = vpop.f32.mrf.mxu0
      %v1178 = vpop.f32.mrf.mxu0
      %v1179 = vadd.f32 0.0, %v1178
      %v1180 = vpop.f32.mrf.mxu0
      %1181 = vmatprep.mubr.bf16.mxu0 0
      %1182 = vmatmul.mubr.bf16.gmra.mxu0 %v992
      %v1183 = vpop.f32.mrf.mxu0
      %v1184 = vadd.f32 0.0, %v1183
      %v1185 = vpop.f32.mrf.mxu0
      %v1186 = vpop.f32.mrf.mxu0
      %v1187 = vadd.f32 0.0, %v1186
      %v1188 = vpop.f32.mrf.mxu0
      %1189 = vmatprep.mubr.bf16.mxu0 0
      %1190 = vmatmul.mubr.bf16.gmra.mxu0 %v993
      %v1191 = vpop.f32.mrf.mxu0
      %v1192 = vadd.f32 0.0, %v1191
      %v1193 = vpop.f32.mrf.mxu0
      %v1194 = vpop.f32.mrf.mxu0
      %v1195 = vadd.f32 0.0, %v1194
      %v1196 = vpop.f32.mrf.mxu0
      %1197 = vmatprep.mubr.bf16.mxu0 0
      %1198 = vmatmul.mubr.bf16.gmra.mxu0 %v994
      %v1199 = vpop.f32.mrf.mxu0
      %v1200 = vadd.f32 0.0, %v1199
      %v1201 = vpop.f32.mrf.mxu0
      %v1202 = vpop.f32.mrf.mxu0
      %v1203 = vadd.f32 0.0, %v1202
      %v1204 = vpop.f32.mrf.mxu0
      %1205 = vmatprep.mubr.bf16.mxu0 0
      %1206 = vmatmul.mubr.bf16.gmra.mxu0 %v995
      %v1207 = vpop.f32.mrf.mxu0
      %v1208 = vadd.f32 0.0, %v1207
      %v1209 = vpop.f32.mrf.mxu0
      %v1210 = vpop.f32.mrf.mxu0
      %v1211 = vadd.f32 0.0, %v1210
      %v1212 = vpop.f32.mrf.mxu0
      %1213 = vmatprep.mubr.bf16.mxu0 0
      %1214 = vmatmul.mubr.bf16.gmra.mxu0 %v996
      %v1215 = vpop.f32.mrf.mxu0
      %v1216 = vadd.f32 0.0, %v1215
      %v1217 = vpop.f32.mrf.mxu0
      %v1218 = vpop.f32.mrf.mxu0
      %v1219 = vadd.f32 0.0, %v1218
      %v1220 = vpop.f32.mrf.mxu0
      %1221 = vdwg.mxu0
      %v1222 = vadd.f32 %v837, %v1096
      %v1223 = vadd.f32 %v838, %v1099
      %v1224 = vadd.f32 %v839, %v1104
      %v1225 = vadd.f32 %v840, %v1107
      %v1226 = vadd.f32 %v841, %v1112
      %v1227 = vadd.f32 %v842, %v1115
      %v1228 = vadd.f32 %v843, %v1120
      %v1229 = vadd.f32 %v844, %v1123
      %v1230 = vadd.f32 %v845, %v1128
      %v1231 = vadd.f32 %v846, %v1131
      %v1232 = vadd.f32 %v847, %v1136
      %v1233 = vadd.f32 %v848, %v1139
      %v1234 = vadd.f32 %v849, %v1144
      %v1235 = vadd.f32 %v850, %v1147
      %v1236 = vadd.f32 %v851, %v1152
      %v1237 = vadd.f32 %v852, %v1155
      %v1238 = vadd.f32 %v853, %v1160
      %v1239 = vadd.f32 %v854, %v1163
      %v1240 = vadd.f32 %v855, %v1168
      %v1241 = vadd.f32 %v856, %v1171
      %v1242 = vadd.f32 %v857, %v1176
      %v1243 = vadd.f32 %v858, %v1179
      %v1244 = vadd.f32 %v859, %v1184
      %v1245 = vadd.f32 %v860, %v1187
      %v1246 = vadd.f32 %v861, %v1192
      %v1247 = vadd.f32 %v862, %v1195
      %v1248 = vadd.f32 %v863, %v1200
      %v1249 = vadd.f32 %v864, %v1203
      %v1250 = vadd.f32 %v865, %v1208
      %v1251 = vadd.f32 %v866, %v1211
      %v1252 = vadd.f32 %v867, %v1216
      %v1253 = vadd.f32 %v868, %v1219
      %v1254 = vld [vmem:[%s397] sm:$0x1]
      %v1256 = vlaneseq
      %v1257 = vshrl.u32 %v1256, 7
      %v1258 = vsub.s32 0, %v1257
      %v1259 = vrot.slane %v1254, %v1258
      %v1261 = vadd.f32 %v1222, %v1259
      %v1262 = vadd.f32 %v1223, %v1259
      %v1263 = vadd.f32 %v1224, %v1259
      %v1264 = vadd.f32 %v1225, %v1259
      %v1265 = vadd.f32 %v1226, %v1259
      %v1266 = vadd.f32 %v1227, %v1259
      %v1267 = vadd.f32 %v1228, %v1259
      %v1268 = vadd.f32 %v1229, %v1259
      %v1269 = vadd.f32 %v1230, %v1259
      %v1270 = vadd.f32 %v1231, %v1259
      %v1271 = vadd.f32 %v1232, %v1259
      %v1272 = vadd.f32 %v1233, %v1259
      %v1273 = vadd.f32 %v1234, %v1259
      %v1274 = vadd.f32 %v1235, %v1259
      %v1275 = vadd.f32 %v1236, %v1259
      %v1276 = vadd.f32 %v1237, %v1259
      %v1277 = vadd.f32 %v1238, %v1259
      %v1278 = vadd.f32 %v1239, %v1259
      %v1279 = vadd.f32 %v1240, %v1259
      %v1280 = vadd.f32 %v1241, %v1259
      %v1281 = vadd.f32 %v1242, %v1259
      %v1282 = vadd.f32 %v1243, %v1259
      %v1283 = vadd.f32 %v1244, %v1259
      %v1284 = vadd.f32 %v1245, %v1259
      %v1285 = vadd.f32 %v1246, %v1259
      %v1286 = vadd.f32 %v1247, %v1259
      %v1287 = vadd.f32 %v1248, %v1259
      %v1288 = vadd.f32 %v1249, %v1259
      %v1289 = vadd.f32 %v1250, %v1259
      %v1290 = vadd.f32 %v1251, %v1259
      %v1291 = vadd.f32 %v1252, %v1259
      %v1292 = vadd.f32 %v1253, %v1259
      %v1293 = vmax.f32 %v1261, 0.0
      %v1294 = vmax.f32 %v1262, 0.0
      %v1295 = vmax.f32 %v1263, 0.0
      %v1296 = vmax.f32 %v1264, 0.0
      %v1297 = vmax.f32 %v1265, 0.0
      %v1298 = vmax.f32 %v1266, 0.0
      %v1299 = vmax.f32 %v1267, 0.0
      %v1300 = vmax.f32 %v1268, 0.0
      %v1301 = vmax.f32 %v1269, 0.0
      %v1302 = vmax.f32 %v1270, 0.0
      %v1303 = vmax.f32 %v1271, 0.0
      %v1304 = vmax.f32 %v1272, 0.0
      %v1305 = vmax.f32 %v1273, 0.0
      %v1306 = vmax.f32 %v1274, 0.0
      %v1307 = vmax.f32 %v1275, 0.0
      %v1308 = vmax.f32 %v1276, 0.0
      %v1309 = vmax.f32 %v1277, 0.0
      %v1310 = vmax.f32 %v1278, 0.0
      %v1311 = vmax.f32 %v1279, 0.0
      %v1312 = vmax.f32 %v1280, 0.0
      %v1313 = vmax.f32 %v1281, 0.0
      %v1314 = vmax.f32 %v1282, 0.0
      %v1315 = vmax.f32 %v1283, 0.0
      %v1316 = vmax.f32 %v1284, 0.0
      %v1317 = vmax.f32 %v1285, 0.0
      %v1318 = vmax.f32 %v1286, 0.0
      %v1319 = vmax.f32 %v1287, 0.0
      %v1320 = vmax.f32 %v1288, 0.0
      %v1321 = vmax.f32 %v1289, 0.0
      %v1322 = vmax.f32 %v1290, 0.0
      %v1323 = vmax.f32 %v1291, 0.0
      %v1324 = vmax.f32 %v1292, 0.0
      %1325 = vst [vmem:[%s410] sm:$0xff] %v1293
      %1326 = vst [vmem:[%s410 + $0x8] sm:$0xff] %v1294
      %1327 = vst [vmem:[%s410 + $0x10] sm:$0xff] %v1295
      %1328 = vst [vmem:[%s410 + $0x18] sm:$0xff] %v1296
      %1329 = vst [vmem:[%s410 + $0x20] sm:$0xff] %v1297
      %1330 = vst [vmem:[%s410 + $0x28] sm:$0xff] %v1298
      %1331 = vst [vmem:[%s410 + $0x30] sm:$0xff] %v1299
      %1332 = vst [vmem:[%s410 + $0x38] sm:$0xff] %v1300
      %1333 = vst [vmem:[%s410 + $0x40] sm:$0xff] %v1301
      %1334 = vst [vmem:[%s410 + $0x48] sm:$0xff] %v1302
      %1335 = vst [vmem:[%s410 + $0x50] sm:$0xff] %v1303
      %1336 = vst [vmem:[%s410 + $0x58] sm:$0xff] %v1304
      %1337 = vst [vmem:[%s410 + $0x60] sm:$0xff] %v1305
      %1338 = vst [vmem:[%s410 + $0x68] sm:$0xff] %v1306
      %1339 = vst [vmem:[%s410 + $0x70] sm:$0xff] %v1307
      %1340 = vst [vmem:[%s410 + $0x78] sm:$0xff] %v1308
      %1341 = vst [vmem:[%s410 + $0x80] sm:$0xff] %v1309
      %1342 = vst [vmem:[%s410 + $0x88] sm:$0xff] %v1310
      %1343 = vst [vmem:[%s410 + $0x90] sm:$0xff] %v1311
      %1344 = vst [vmem:[%s410 + $0x98] sm:$0xff] %v1312
      %1345 = vst [vmem:[%s410 + $0xa0] sm:$0xff] %v1313
      %1346 = vst [vmem:[%s410 + $0xa8] sm:$0xff] %v1314
      %1347 = vst [vmem:[%s410 + $0xb0] sm:$0xff] %v1315
      %1348 = vst [vmem:[%s410 + $0xb8] sm:$0xff] %v1316
      %1349 = vst [vmem:[%s410 + $0xc0] sm:$0xff] %v1317
      %1350 = vst [vmem:[%s410 + $0xc8] sm:$0xff] %v1318
      %1351 = vst [vmem:[%s410 + $0xd0] sm:$0xff] %v1319
      %1352 = vst [vmem:[%s410 + $0xd8] sm:$0xff] %v1320
      %1353 = vst [vmem:[%s410 + $0xe0] sm:$0xff] %v1321
      %1354 = vst [vmem:[%s410 + $0xe8] sm:$0xff] %v1322
      %1355 = vst [vmem:[%s410 + $0xf0] sm:$0xff] %v1323
      %1356 = vst [vmem:[%s410 + $0xf8] sm:$0xff] %v1324
      %s1357 = smul.u32 16, %s24
      %p1358 = scmp.lt.s32.totalorder %s22, 1
      %s1359 = scalar_select %p1358, %s22, 1
      %p1360 = scmp.lt.s32.totalorder %s1357, 15
      %s1361 = scalar_select %p1360, %s1357, 15
      %p1362 = scmp.lt.s32.totalorder %s23, 0
      %s1363 = scalar_select %p1362, %s23, 0
      %s1364 = smul.addr %s1361, 2
      %s1365 = sadd.s32 %s1363, %s1364
      %s1366 = smul.addr %s1359, 32
      %s1367 = sadd.s32 %s1365, %s1366
      %s1368 = smul.addr %s1367, 8
      %s1369 = scalar_lea.vmem %s6, %s1368
      // Predicated region
      $region45: #{conv_block_forward.3} parent=43 // pred_check
        %p1370 = pneg %p218
      $region46: #{conv_block_forward.3} parent=43 // pred_check_branch
        %1372 = sbr.rel (%p1370) target = $region48
      $region47: #{conv_block_forward.3} parent=43 // pred_region
        %s1373 = smul.u32 16, %s24
      $region48: #{conv_block_forward.3} parent=43 // pred_fallthru
        _
    $region44: #{conv_block_forward.3} parent=5 // pred_fallthru
      _
    %p1374 = scmp.le.s32.totalorder 2, %s12
    // Predicated region
    $region49: #{conv_block_forward.3} parent=5 // pred_check
      %p1375 = pneg %p1374
    $region50: #{conv_block_forward.3} parent=5 // pred_check_branch
      %1377 = sbr.rel (%p1375) target = $region52
    $region51: #{conv_block_forward.3} parent=5 // pred_region
      %s1378 = ssub.s32 %s12, 2
      // Predicated region
      $region53: #{conv_block_forward.3} parent=51 // pred_check
        %p1379 = pneg %p224
      $region54: #{conv_block_forward.3} parent=51 // pred_check_branch
        %1381 = sbr.rel (%p1379) target = $region56
      $region55: #{conv_block_forward.3} parent=51 // pred_region
        %s1382 = smul.u32 16, %s27
        %p1383 = scmp.lt.s32.totalorder %s25, 1
        %s1384 = scalar_select %p1383, %s25, 1
        %p1385 = scmp.lt.s32.totalorder %s1382, 15
        %s1386 = scalar_select %p1385, %s1382, 15
        %p1387 = scmp.lt.s32.totalorder %s26, 0
        %s1388 = scalar_select %p1387, %s26, 0
        %s1389 = smul.addr %s1386, 2
        %s1390 = sadd.s32 %s1388, %s1389
        %s1391 = smul.addr %s1384, 32
        %s1392 = sadd.s32 %s1390, %s1391
        %s1393 = smul.addr %s1392, 8
        %s1394 = scalar_lea.vmem %s6, %s1393
      $region56: #{conv_block_forward.3} parent=51 // pred_fallthru
        _
    $region52: #{conv_block_forward.3} parent=5 // pred_fallthru
      _
  $region6: #{conv_block_forward.3} parent=0 // loop_footer
    %s16 = sadd.s32 1, %s12
  $region7: #{conv_block_forward.3} parent=0 // loop_footer_branch
    %11 = sbr.rel target = $region3
  $region8: #{conv_block_forward.3} parent=0 // loop_exit
    _

</llo_original>
